<compile_context>
chip_gen: v7x
topology: tpu7x:2x2x1
jax: 0.10.0
libtpu: 0.0.40
codegen_flags: <defaults>
</compile_context>

<pallas_src>
import functools
from typing import NamedTuple

import jax
import jax.numpy as jnp
from jax.experimental import pallas as pl
from jax.experimental.pallas import tpu as pltpu

LEAKY_SLOPE = 0.2
BN_EPS = 1e-5


class BlockCfg(NamedTuple):
    cin: int
    cout: int
    use_bn: bool
    act: str          # "leaky" | "tanh"
    pool: bool        # MaxPool1d(2) after the activation (DBlock)
    upsample: bool    # nearest x2 upsample before the conv (UBlock)


# ---------------------------------------------------------------------------
# Kernel helpers (all traced inside the single fused kernel)
# ---------------------------------------------------------------------------
def _conv_taps(act, B, L):
    """im2col for a k=3 'same' conv.

    act: (Cin, B*L), batch-major lanes.  Returns (3*Cin, B*L) with row-block
    order [x[l-1] | x[l] | x[l+1]], zero-padded independently per batch
    segment (so taps never bleed across batch boundaries).
    """
    cin = act.shape[0]
    z = jnp.zeros((cin, 1), jnp.float32)
    cols = []
    for b in range(B):                       # B is small & static: unrolled
        a = act[:, b * L:(b + 1) * L]
        left = jnp.concatenate([z, a[:, :L - 1]], axis=1)    # x[l-1]
        right = jnp.concatenate([a[:, 1:], z], axis=1)       # x[l+1]
        cols.append(jnp.concatenate([left, a, right], axis=0))
    return jnp.concatenate(cols, axis=1)


def _upsample_matrix(N):
    """(N, 2N) 0/1 matrix: up[:, i] = y[:, i // 2] (nearest x2).

    Works directly on batch-major lanes because i // 2 maps b*2L + j to
    b*L + j//2.  Division-free construction (iota + compare only).
    """
    r = jax.lax.broadcasted_iota(jnp.int32, (N, 2 * N), 0)
    i = jax.lax.broadcasted_iota(jnp.int32, (N, 2 * N), 1)
    return jnp.logical_or(i == 2 * r, i == 2 * r + 1).astype(jnp.float32)


def _pool_select_matrices(N):
    """(N, N//2) even / odd lane selection matrices for MaxPool1d(2)."""
    r = jax.lax.broadcasted_iota(jnp.int32, (N, N // 2), 0)
    j = jax.lax.broadcasted_iota(jnp.int32, (N, N // 2), 1)
    s_even = (r == 2 * j).astype(jnp.float32)
    s_odd = (r == 2 * j + 1).astype(jnp.float32)
    return s_even, s_odd


# ---------------------------------------------------------------------------
# The single fused U-Net kernel
# ---------------------------------------------------------------------------
def _unet_kernel(*refs, cfg):
    """refs = (x_ref, <per-block param refs...>, o_ref).

    x_ref : (B, C0, L0)  NCL input
    params: per block  w (Cout, 3*Cin), bias (Cout, 1),
            [+ gamma (Cout, 1), beta (Cout, 1) if the block has BatchNorm]
    o_ref : (B, 2, L0)   NCL output
    """
    x_ref = refs[0]
    o_ref = refs[-1]
    prefs = refs[1:-1]

    B, _, L0 = x_ref.shape
    x = x_ref[...]
    # NCL -> (C0, B*L0): channels on sublanes, batch-major positions on lanes.
    act = jnp.concatenate([x[b] for b in range(B)], axis=-1)
    L = L0

    ri = 0
    for c in cfg:
        w = prefs[ri][...]; ri += 1          # (cout, 3*cin), tap-major columns
        bias = prefs[ri][...]; ri += 1       # (cout, 1)
        if c.use_bn:
            gamma = prefs[ri][...]; ri += 1  # (cout, 1)
            beta = prefs[ri][...]; ri += 1   # (cout, 1)

        if c.upsample:                       # nn.Upsample(scale=2, 'nearest')
            N = B * L
            act = jnp.dot(act, _upsample_matrix(N),
                          preferred_element_type=jnp.float32)
            L = L * 2

        # Conv1d(k=3, s=1, p=1): one im2col matmul per block (batch folded).
        xc = _conv_taps(act, B, L)                               # (3*cin, B*L)
        y = jnp.dot(w, xc, preferred_element_type=jnp.float32) + bias

        if c.use_bn:
            # PyTorch training-mode BatchNorm1d: biased stats over (batch, L),
            # computed in a single pass (sum & sum of squares).
            n = float(B * L)
            s = jnp.sum(y, axis=1, keepdims=True)
            s2 = jnp.sum(y * y, axis=1, keepdims=True)
            mean = s / n
            var = s2 / n - mean * mean
            y = (y - mean) * jax.lax.rsqrt(var + BN_EPS)
            y = y * gamma + beta

        if c.act == "leaky":
            y = jnp.where(y > 0, y, LEAKY_SLOPE * y)
        elif c.act == "tanh":
            y = jnp.tanh(y)

        if c.pool:                           # MaxPool1d(kernel=2, stride=2)
            N = B * L
            s_even, s_odd = _pool_select_matrices(N)
            y = jnp.maximum(
                jnp.dot(y, s_even, preferred_element_type=jnp.float32),
                jnp.dot(y, s_odd, preferred_element_type=jnp.float32))
            L = L // 2

        act = y

    # (2, B*L) -> NCL (B, 2, L)
    out = jnp.stack([act[:, b * L:(b + 1) * L] for b in range(B)], axis=0)
    o_ref[...] = out.astype(o_ref.dtype)


# ---------------------------------------------------------------------------
# Wrapper + parameters
# ---------------------------------------------------------------------------
def _full_spec(shape):
    nd = len(shape)
    return pl.BlockSpec(shape, lambda i, _nd=nd: (0,) * _nd)


def unet_forward(x_ncl, params, cfg):
    """x_ncl: (B, 2, L) as in the PyTorch module.  Returns (B, 2, L)."""
    B, _, L = x_ncl.shape
    flat_inputs = [x_ncl]
    for p in params:
        flat_inputs.extend(p)

    kernel = functools.partial(_unet_kernel, cfg=tuple(cfg))
    return pl.pallas_call(
        kernel,
        out_shape=jax.ShapeDtypeStruct((B, 2, L), jnp.float32),
        grid=(1,),
        in_specs=[_full_spec(a.shape) for a in flat_inputs],
        out_specs=_full_spec((B, 2, L)),
        compiler_params=pltpu.CompilerParams(
            dimension_semantics=("arbitrary",)),
    )(*flat_inputs)


def make_unet(channels, key):
    """Build (cfg, params).  Synthetic init matching the module's
    __initialize_weights: conv / BN weights ~ N(0, 0.02), biases 0.
    Conv weights are pre-folded to (Cout, 3*Cin) with tap-major columns."""
    cfg = []
    for cin, cout in zip(channels[:-1], channels[1:]):          # DBlocks
        cfg.append(BlockCfg(cin, cout, True, "leaky", True, False))
    cfg.append(BlockCfg(channels[-1], channels[-1],             # Bottleneck
                        True, "leaky", False, False))
    for cin, cout in zip(channels[-1:0:-1], channels[-2::-1]):  # UBlocks
        cfg.append(BlockCfg(cin, cout, True, "leaky", False, True))
    cfg.append(BlockCfg(channels[0], 2, False, "tanh", False, False))  # top

    keys = jax.random.split(key, len(cfg))
    params = []
    for c, k in zip(cfg, keys):
        kw, kg = jax.random.split(k)
        # PyTorch Conv1d weight layout (cout, cin, 3); fold to (cout, 3*cin)
        # with column index = tap * cin + ci (matches _conv_taps row order).
        w = 0.02 * jax.random.normal(kw, (c.cout, c.cin, 3), jnp.float32)
        w_flat = jnp.transpose(w, (0, 2, 1)).reshape(c.cout, 3 * c.cin)
        b = jnp.zeros((c.cout, 1), jnp.float32)
        p = [w_flat, b]
        if c.use_bn:
            gamma = 0.02 * jax.random.normal(kg, (c.cout, 1), jnp.float32)
            beta = jnp.zeros((c.cout, 1), jnp.float32)
            p += [gamma, beta]
        params.append(tuple(p))
    return cfg, params


if __name__ == "__main__":
    channels = [2, 4, 8]        # Unet(channels=[2, 4, 8])
    B, L = 2, 16                # input contours (B, 2, L)

    key = jax.random.PRNGKey(0)
    kp, kx = jax.random.split(key)
    cfg, params = make_unet(channels, kp)
    x = jax.random.normal(kx, (B, 2, L), jnp.float32)

    fwd = jax.jit(lambda v: unet_forward(v, params, cfg))
    out = jax.block_until_ready(fwd(x))

    assert out.shape == (B, 2, L), out.shape
    assert bool(jnp.all(jnp.isfinite(out)))
    assert bool(jnp.all(jnp.abs(out) <= 1.0))   # tanh output range
    print("KERNEL_OK")
</pallas_src>

<mosaic_0001>
module attributes {stable_mosaic.version = 11 : i64} {
  func.func @_unet_kernel(%arg0: i32, %arg1: memref<2x2x16xf32, #tpu.memory_space<vmem>>, %arg2: memref<4x6xf32, #tpu.memory_space<vmem>>, %arg3: memref<4x1xf32, #tpu.memory_space<vmem>>, %arg4: memref<4x1xf32, #tpu.memory_space<vmem>>, %arg5: memref<4x1xf32, #tpu.memory_space<vmem>>, %arg6: memref<8x12xf32, #tpu.memory_space<vmem>>, %arg7: memref<8x1xf32, #tpu.memory_space<vmem>>, %arg8: memref<8x1xf32, #tpu.memory_space<vmem>>, %arg9: memref<8x1xf32, #tpu.memory_space<vmem>>, %arg10: memref<8x24xf32, #tpu.memory_space<vmem>>, %arg11: memref<8x1xf32, #tpu.memory_space<vmem>>, %arg12: memref<8x1xf32, #tpu.memory_space<vmem>>, %arg13: memref<8x1xf32, #tpu.memory_space<vmem>>, %arg14: memref<4x24xf32, #tpu.memory_space<vmem>>, %arg15: memref<4x1xf32, #tpu.memory_space<vmem>>, %arg16: memref<4x1xf32, #tpu.memory_space<vmem>>, %arg17: memref<4x1xf32, #tpu.memory_space<vmem>>, %arg18: memref<2x12xf32, #tpu.memory_space<vmem>>, %arg19: memref<2x1xf32, #tpu.memory_space<vmem>>, %arg20: memref<2x1xf32, #tpu.memory_space<vmem>>, %arg21: memref<2x1xf32, #tpu.memory_space<vmem>>, %arg22: memref<2x6xf32, #tpu.memory_space<vmem>>, %arg23: memref<2x1xf32, #tpu.memory_space<vmem>>, %arg24: memref<2x2x16xf32, #tpu.memory_space<vmem>>) attributes {dimension_semantics = [#tpu.dimension_semantics<arbitrary>], iteration_bounds = array<i64: 1>, scalar_prefetch = 0 : i64, scratch_operands = 0 : i64, tpu.core_type = #tpu.core_type<tc>, window_params = [{pipeline_mode = #tpu.pipeline_mode<synchronous>, transform_indices = @transform_0, window_bounds = array<i64: 2, 2, 16>}, {pipeline_mode = #tpu.pipeline_mode<synchronous>, transform_indices = @transform_1, window_bounds = array<i64: 4, 6>}, {pipeline_mode = #tpu.pipeline_mode<synchronous>, transform_indices = @transform_2, window_bounds = array<i64: 4, 1>}, {pipeline_mode = #tpu.pipeline_mode<synchronous>, transform_indices = @transform_3, window_bounds = array<i64: 4, 1>}, {pipeline_mode = #tpu.pipeline_mode<synchronous>, transform_indices = @transform_4, window_bounds = array<i64: 4, 1>}, {pipeline_mode = #tpu.pipeline_mode<synchronous>, transform_indices = @transform_5, window_bounds = array<i64: 8, 12>}, {pipeline_mode = #tpu.pipeline_mode<synchronous>, transform_indices = @transform_6, window_bounds = array<i64: 8, 1>}, {pipeline_mode = #tpu.pipeline_mode<synchronous>, transform_indices = @transform_7, window_bounds = array<i64: 8, 1>}, {pipeline_mode = #tpu.pipeline_mode<synchronous>, transform_indices = @transform_8, window_bounds = array<i64: 8, 1>}, {pipeline_mode = #tpu.pipeline_mode<synchronous>, transform_indices = @transform_9, window_bounds = array<i64: 8, 24>}, {pipeline_mode = #tpu.pipeline_mode<synchronous>, transform_indices = @transform_10, window_bounds = array<i64: 8, 1>}, {pipeline_mode = #tpu.pipeline_mode<synchronous>, transform_indices = @transform_11, window_bounds = array<i64: 8, 1>}, {pipeline_mode = #tpu.pipeline_mode<synchronous>, transform_indices = @transform_12, window_bounds = array<i64: 8, 1>}, {pipeline_mode = #tpu.pipeline_mode<synchronous>, transform_indices = @transform_13, window_bounds = array<i64: 4, 24>}, {pipeline_mode = #tpu.pipeline_mode<synchronous>, transform_indices = @transform_14, window_bounds = array<i64: 4, 1>}, {pipeline_mode = #tpu.pipeline_mode<synchronous>, transform_indices = @transform_15, window_bounds = array<i64: 4, 1>}, {pipeline_mode = #tpu.pipeline_mode<synchronous>, transform_indices = @transform_16, window_bounds = array<i64: 4, 1>}, {pipeline_mode = #tpu.pipeline_mode<synchronous>, transform_indices = @transform_17, window_bounds = array<i64: 2, 12>}, {pipeline_mode = #tpu.pipeline_mode<synchronous>, transform_indices = @transform_18, window_bounds = array<i64: 2, 1>}, {pipeline_mode = #tpu.pipeline_mode<synchronous>, transform_indices = @transform_19, window_bounds = array<i64: 2, 1>}, {pipeline_mode = #tpu.pipeline_mode<synchronous>, transform_indices = @transform_20, window_bounds = array<i64: 2, 1>}, {pipeline_mode = #tpu.pipeline_mode<synchronous>, transform_indices = @transform_21, window_bounds = array<i64: 2, 6>}, {pipeline_mode = #tpu.pipeline_mode<synchronous>, transform_indices = @transform_22, window_bounds = array<i64: 2, 1>}, {pipeline_mode = #tpu.pipeline_mode<synchronous>, transform_indices = @transform_23, window_bounds = array<i64: 2, 2, 16>}]} {
    %c0 = arith.constant 0 : index
    %c0_0 = arith.constant 0 : index
    %c0_1 = arith.constant 0 : index
    %0 = vector.load %arg1[%c0, %c0_0, %c0_1] : memref<2x2x16xf32, #tpu.memory_space<vmem>>, vector<2x2x16xf32>
    %1 = vector.extract_strided_slice %0 {offsets = [0, 0, 0], sizes = [1, 2, 16], strides = [1, 1, 1]} : vector<2x2x16xf32> to vector<1x2x16xf32>
    %2 = vector.shape_cast %1 : vector<1x2x16xf32> to vector<2x16xf32>
    %3 = vector.extract_strided_slice %0 {offsets = [1, 0, 0], sizes = [1, 2, 16], strides = [1, 1, 1]} : vector<2x2x16xf32> to vector<1x2x16xf32>
    %4 = vector.shape_cast %3 : vector<1x2x16xf32> to vector<2x16xf32>
    %5 = tpu.concatenate %2, %4 in 1 : vector<2x16xf32>, vector<2x16xf32> -> vector<2x32xf32>
    %c0_2 = arith.constant 0 : index
    %c0_3 = arith.constant 0 : index
    %6 = vector.load %arg2[%c0_2, %c0_3] : memref<4x6xf32, #tpu.memory_space<vmem>>, vector<4x6xf32>
    %c0_4 = arith.constant 0 : index
    %c0_5 = arith.constant 0 : index
    %7 = vector.load %arg3[%c0_4, %c0_5] : memref<4x1xf32, #tpu.memory_space<vmem>>, vector<4x1xf32>
    %c0_6 = arith.constant 0 : index
    %c0_7 = arith.constant 0 : index
    %8 = vector.load %arg4[%c0_6, %c0_7] : memref<4x1xf32, #tpu.memory_space<vmem>>, vector<4x1xf32>
    %c0_8 = arith.constant 0 : index
    %c0_9 = arith.constant 0 : index
    %9 = vector.load %arg5[%c0_8, %c0_9] : memref<4x1xf32, #tpu.memory_space<vmem>>, vector<4x1xf32>
    %cst = arith.constant 0.000000e+00 : f32
    %10 = vector.broadcast %cst : f32 to vector<2x1xf32>
    %11 = vector.extract_strided_slice %5 {offsets = [0, 0], sizes = [2, 16], strides = [1, 1]} : vector<2x32xf32> to vector<2x16xf32>
    %12 = vector.extract_strided_slice %11 {offsets = [0, 0], sizes = [2, 15], strides = [1, 1]} : vector<2x16xf32> to vector<2x15xf32>
    %13 = tpu.concatenate %10, %12 in 1 : vector<2x1xf32>, vector<2x15xf32> -> vector<2x16xf32>
    %14 = vector.extract_strided_slice %11 {offsets = [0, 1], sizes = [2, 15], strides = [1, 1]} : vector<2x16xf32> to vector<2x15xf32>
    %15 = tpu.concatenate %14, %10 in 1 : vector<2x15xf32>, vector<2x1xf32> -> vector<2x16xf32>
    %16 = tpu.concatenate %13, %11, %15 in 0 : vector<2x16xf32>, vector<2x16xf32>, vector<2x16xf32> -> vector<6x16xf32>
    %17 = vector.extract_strided_slice %5 {offsets = [0, 16], sizes = [2, 16], strides = [1, 1]} : vector<2x32xf32> to vector<2x16xf32>
    %18 = vector.extract_strided_slice %17 {offsets = [0, 0], sizes = [2, 15], strides = [1, 1]} : vector<2x16xf32> to vector<2x15xf32>
    %19 = tpu.concatenate %10, %18 in 1 : vector<2x1xf32>, vector<2x15xf32> -> vector<2x16xf32>
    %20 = vector.extract_strided_slice %17 {offsets = [0, 1], sizes = [2, 15], strides = [1, 1]} : vector<2x16xf32> to vector<2x15xf32>
    %21 = tpu.concatenate %20, %10 in 1 : vector<2x15xf32>, vector<2x1xf32> -> vector<2x16xf32>
    %22 = tpu.concatenate %19, %17, %21 in 0 : vector<2x16xf32>, vector<2x16xf32>, vector<2x16xf32> -> vector<6x16xf32>
    %23 = tpu.concatenate %16, %22 in 1 : vector<6x16xf32>, vector<6x16xf32> -> vector<6x32xf32>
    %cst_10 = arith.constant dense<0.000000e+00> : vector<4x32xf32>
    %24 = tpu.matmul %6, %23, %cst_10 {dimension_numbers = #tpu.dot_dimension_numbers<[1], [0], [0], [1], [0, 0, 1, 1], [], []>} : vector<4x6xf32>, vector<6x32xf32>, vector<4x32xf32> -> vector<4x32xf32>
    %25 = vector.broadcast %7 : vector<4x1xf32> to vector<4x32xf32>
    %26 = arith.addf %24, %25 : vector<4x32xf32>
    %cst_11 = arith.constant dense<0.000000e+00> : vector<4xf32>
    %27 = vector.multi_reduction <add>, %26, %cst_11 [1] : vector<4x32xf32> to vector<4xf32>
    %28 = vector.shape_cast %27 : vector<4xf32> to vector<4x1xf32>
    %29 = arith.mulf %26, %26 : vector<4x32xf32>
    %cst_12 = arith.constant dense<0.000000e+00> : vector<4xf32>
    %30 = vector.multi_reduction <add>, %29, %cst_12 [1] : vector<4x32xf32> to vector<4xf32>
    %31 = vector.shape_cast %30 : vector<4xf32> to vector<4x1xf32>
    %cst_13 = arith.constant 3.200000e+01 : f32
    %32 = vector.broadcast %cst_13 : f32 to vector<4x1xf32>
    %33 = arith.divf %28, %32 : vector<4x1xf32>
    %cst_14 = arith.constant 3.200000e+01 : f32
    %34 = vector.broadcast %cst_14 : f32 to vector<4x1xf32>
    %35 = arith.divf %31, %34 : vector<4x1xf32>
    %36 = arith.mulf %33, %33 : vector<4x1xf32>
    %37 = arith.subf %35, %36 : vector<4x1xf32>
    %38 = vector.broadcast %33 : vector<4x1xf32> to vector<4x32xf32>
    %39 = arith.subf %26, %38 : vector<4x32xf32>
    %cst_15 = arith.constant 9.99999974E-6 : f32
    %40 = vector.broadcast %cst_15 : f32 to vector<4x1xf32>
    %41 = arith.addf %37, %40 : vector<4x1xf32>
    %42 = math.rsqrt %41 : vector<4x1xf32>
    %43 = vector.broadcast %42 : vector<4x1xf32> to vector<4x32xf32>
    %44 = arith.mulf %39, %43 : vector<4x32xf32>
    %45 = vector.broadcast %8 : vector<4x1xf32> to vector<4x32xf32>
    %46 = arith.mulf %44, %45 : vector<4x32xf32>
    %47 = vector.broadcast %9 : vector<4x1xf32> to vector<4x32xf32>
    %48 = arith.addf %46, %47 : vector<4x32xf32>
    %cst_16 = arith.constant 0.000000e+00 : f32
    %49 = vector.broadcast %cst_16 : f32 to vector<4x32xf32>
    %50 = arith.cmpf ogt, %48, %49 : vector<4x32xf32>
    %cst_17 = arith.constant 2.000000e-01 : f32
    %51 = vector.broadcast %cst_17 : f32 to vector<4x32xf32>
    %52 = arith.mulf %51, %48 : vector<4x32xf32>
    %53 = arith.select %50, %48, %52 : vector<4x32xi1>, vector<4x32xf32>
    %54 = tpu.iota {dimensions = array<i32: 0>} : vector<32x16xi32>
    %55 = tpu.iota {dimensions = array<i32: 1>} : vector<32x16xi32>
    %c2_i32 = arith.constant 2 : i32
    %56 = vector.broadcast %c2_i32 : i32 to vector<32x16xi32>
    %57 = arith.muli %56, %55 : vector<32x16xi32>
    %58 = arith.cmpi eq, %54, %57 : vector<32x16xi32>
    %59 = arith.extui %58 : vector<32x16xi1> to vector<32x16xi32>
    %60 = arith.sitofp %59 : vector<32x16xi32> to vector<32x16xf32>
    %c2_i32_18 = arith.constant 2 : i32
    %61 = vector.broadcast %c2_i32_18 : i32 to vector<32x16xi32>
    %62 = arith.muli %61, %55 : vector<32x16xi32>
    %c1_i32 = arith.constant 1 : i32
    %63 = vector.broadcast %c1_i32 : i32 to vector<32x16xi32>
    %64 = arith.addi %62, %63 : vector<32x16xi32>
    %65 = arith.cmpi eq, %54, %64 : vector<32x16xi32>
    %66 = arith.extui %65 : vector<32x16xi1> to vector<32x16xi32>
    %67 = arith.sitofp %66 : vector<32x16xi32> to vector<32x16xf32>
    %cst_19 = arith.constant dense<0.000000e+00> : vector<4x16xf32>
    %68 = tpu.matmul %53, %60, %cst_19 {dimension_numbers = #tpu.dot_dimension_numbers<[1], [0], [0], [1], [0, 0, 1, 1], [], []>} : vector<4x32xf32>, vector<32x16xf32>, vector<4x16xf32> -> vector<4x16xf32>
    %cst_20 = arith.constant dense<0.000000e+00> : vector<4x16xf32>
    %69 = tpu.matmul %53, %67, %cst_20 {dimension_numbers = #tpu.dot_dimension_numbers<[1], [0], [0], [1], [0, 0, 1, 1], [], []>} : vector<4x32xf32>, vector<32x16xf32>, vector<4x16xf32> -> vector<4x16xf32>
    %70 = arith.maximumf %68, %69 : vector<4x16xf32>
    %c0_21 = arith.constant 0 : index
    %c0_22 = arith.constant 0 : index
    %71 = vector.load %arg6[%c0_21, %c0_22] : memref<8x12xf32, #tpu.memory_space<vmem>>, vector<8x12xf32>
    %c0_23 = arith.constant 0 : index
    %c0_24 = arith.constant 0 : index
    %72 = vector.load %arg7[%c0_23, %c0_24] : memref<8x1xf32, #tpu.memory_space<vmem>>, vector<8x1xf32>
    %c0_25 = arith.constant 0 : index
    %c0_26 = arith.constant 0 : index
    %73 = vector.load %arg8[%c0_25, %c0_26] : memref<8x1xf32, #tpu.memory_space<vmem>>, vector<8x1xf32>
    %c0_27 = arith.constant 0 : index
    %c0_28 = arith.constant 0 : index
    %74 = vector.load %arg9[%c0_27, %c0_28] : memref<8x1xf32, #tpu.memory_space<vmem>>, vector<8x1xf32>
    %cst_29 = arith.constant 0.000000e+00 : f32
    %75 = vector.broadcast %cst_29 : f32 to vector<4x1xf32>
    %76 = vector.extract_strided_slice %70 {offsets = [0, 0], sizes = [4, 8], strides = [1, 1]} : vector<4x16xf32> to vector<4x8xf32>
    %77 = vector.extract_strided_slice %76 {offsets = [0, 0], sizes = [4, 7], strides = [1, 1]} : vector<4x8xf32> to vector<4x7xf32>
    %78 = tpu.concatenate %75, %77 in 1 : vector<4x1xf32>, vector<4x7xf32> -> vector<4x8xf32>
    %79 = vector.extract_strided_slice %76 {offsets = [0, 1], sizes = [4, 7], strides = [1, 1]} : vector<4x8xf32> to vector<4x7xf32>
    %80 = tpu.concatenate %79, %75 in 1 : vector<4x7xf32>, vector<4x1xf32> -> vector<4x8xf32>
    %81 = tpu.concatenate %78, %76, %80 in 0 : vector<4x8xf32>, vector<4x8xf32>, vector<4x8xf32> -> vector<12x8xf32>
    %82 = vector.extract_strided_slice %70 {offsets = [0, 8], sizes = [4, 8], strides = [1, 1]} : vector<4x16xf32> to vector<4x8xf32>
    %83 = vector.extract_strided_slice %82 {offsets = [0, 0], sizes = [4, 7], strides = [1, 1]} : vector<4x8xf32> to vector<4x7xf32>
    %84 = tpu.concatenate %75, %83 in 1 : vector<4x1xf32>, vector<4x7xf32> -> vector<4x8xf32>
    %85 = vector.extract_strided_slice %82 {offsets = [0, 1], sizes = [4, 7], strides = [1, 1]} : vector<4x8xf32> to vector<4x7xf32>
    %86 = tpu.concatenate %85, %75 in 1 : vector<4x7xf32>, vector<4x1xf32> -> vector<4x8xf32>
    %87 = tpu.concatenate %84, %82, %86 in 0 : vector<4x8xf32>, vector<4x8xf32>, vector<4x8xf32> -> vector<12x8xf32>
    %88 = tpu.concatenate %81, %87 in 1 : vector<12x8xf32>, vector<12x8xf32> -> vector<12x16xf32>
    %cst_30 = arith.constant dense<0.000000e+00> : vector<8x16xf32>
    %89 = tpu.matmul %71, %88, %cst_30 {dimension_numbers = #tpu.dot_dimension_numbers<[1], [0], [0], [1], [0, 0, 1, 1], [], []>} : vector<8x12xf32>, vector<12x16xf32>, vector<8x16xf32> -> vector<8x16xf32>
    %90 = vector.broadcast %72 : vector<8x1xf32> to vector<8x16xf32>
    %91 = arith.addf %89, %90 : vector<8x16xf32>
    %cst_31 = arith.constant dense<0.000000e+00> : vector<8xf32>
    %92 = vector.multi_reduction <add>, %91, %cst_31 [1] : vector<8x16xf32> to vector<8xf32>
    %93 = vector.shape_cast %92 : vector<8xf32> to vector<8x1xf32>
    %94 = arith.mulf %91, %91 : vector<8x16xf32>
    %cst_32 = arith.constant dense<0.000000e+00> : vector<8xf32>
    %95 = vector.multi_reduction <add>, %94, %cst_32 [1] : vector<8x16xf32> to vector<8xf32>
    %96 = vector.shape_cast %95 : vector<8xf32> to vector<8x1xf32>
    %cst_33 = arith.constant 1.600000e+01 : f32
    %97 = vector.broadcast %cst_33 : f32 to vector<8x1xf32>
    %98 = arith.divf %93, %97 : vector<8x1xf32>
    %cst_34 = arith.constant 1.600000e+01 : f32
    %99 = vector.broadcast %cst_34 : f32 to vector<8x1xf32>
    %100 = arith.divf %96, %99 : vector<8x1xf32>
    %101 = arith.mulf %98, %98 : vector<8x1xf32>
    %102 = arith.subf %100, %101 : vector<8x1xf32>
    %103 = vector.broadcast %98 : vector<8x1xf32> to vector<8x16xf32>
    %104 = arith.subf %91, %103 : vector<8x16xf32>
    %cst_35 = arith.constant 9.99999974E-6 : f32
    %105 = vector.broadcast %cst_35 : f32 to vector<8x1xf32>
    %106 = arith.addf %102, %105 : vector<8x1xf32>
    %107 = math.rsqrt %106 : vector<8x1xf32>
    %108 = vector.broadcast %107 : vector<8x1xf32> to vector<8x16xf32>
    %109 = arith.mulf %104, %108 : vector<8x16xf32>
    %110 = vector.broadcast %73 : vector<8x1xf32> to vector<8x16xf32>
    %111 = arith.mulf %109, %110 : vector<8x16xf32>
    %112 = vector.broadcast %74 : vector<8x1xf32> to vector<8x16xf32>
    %113 = arith.addf %111, %112 : vector<8x16xf32>
    %cst_36 = arith.constant 0.000000e+00 : f32
    %114 = vector.broadcast %cst_36 : f32 to vector<8x16xf32>
    %115 = arith.cmpf ogt, %113, %114 : vector<8x16xf32>
    %cst_37 = arith.constant 2.000000e-01 : f32
    %116 = vector.broadcast %cst_37 : f32 to vector<8x16xf32>
    %117 = arith.mulf %116, %113 : vector<8x16xf32>
    %118 = arith.select %115, %113, %117 : vector<8x16xi1>, vector<8x16xf32>
    %119 = tpu.iota {dimensions = array<i32: 0>} : vector<16x8xi32>
    %120 = tpu.iota {dimensions = array<i32: 1>} : vector<16x8xi32>
    %c2_i32_38 = arith.constant 2 : i32
    %121 = vector.broadcast %c2_i32_38 : i32 to vector<16x8xi32>
    %122 = arith.muli %121, %120 : vector<16x8xi32>
    %123 = arith.cmpi eq, %119, %122 : vector<16x8xi32>
    %124 = arith.extui %123 : vector<16x8xi1> to vector<16x8xi32>
    %125 = arith.sitofp %124 : vector<16x8xi32> to vector<16x8xf32>
    %c2_i32_39 = arith.constant 2 : i32
    %126 = vector.broadcast %c2_i32_39 : i32 to vector<16x8xi32>
    %127 = arith.muli %126, %120 : vector<16x8xi32>
    %c1_i32_40 = arith.constant 1 : i32
    %128 = vector.broadcast %c1_i32_40 : i32 to vector<16x8xi32>
    %129 = arith.addi %127, %128 : vector<16x8xi32>
    %130 = arith.cmpi eq, %119, %129 : vector<16x8xi32>
    %131 = arith.extui %130 : vector<16x8xi1> to vector<16x8xi32>
    %132 = arith.sitofp %131 : vector<16x8xi32> to vector<16x8xf32>
    %cst_41 = arith.constant dense<0.000000e+00> : vector<8x8xf32>
    %133 = tpu.matmul %118, %125, %cst_41 {dimension_numbers = #tpu.dot_dimension_numbers<[1], [0], [0], [1], [0, 0, 1, 1], [], []>} : vector<8x16xf32>, vector<16x8xf32>, vector<8x8xf32> -> vector<8x8xf32>
    %cst_42 = arith.constant dense<0.000000e+00> : vector<8x8xf32>
    %134 = tpu.matmul %118, %132, %cst_42 {dimension_numbers = #tpu.dot_dimension_numbers<[1], [0], [0], [1], [0, 0, 1, 1], [], []>} : vector<8x16xf32>, vector<16x8xf32>, vector<8x8xf32> -> vector<8x8xf32>
    %135 = arith.maximumf %133, %134 : vector<8x8xf32>
    %c0_43 = arith.constant 0 : index
    %c0_44 = arith.constant 0 : index
    %136 = vector.load %arg10[%c0_43, %c0_44] : memref<8x24xf32, #tpu.memory_space<vmem>>, vector<8x24xf32>
    %c0_45 = arith.constant 0 : index
    %c0_46 = arith.constant 0 : index
    %137 = vector.load %arg11[%c0_45, %c0_46] : memref<8x1xf32, #tpu.memory_space<vmem>>, vector<8x1xf32>
    %c0_47 = arith.constant 0 : index
    %c0_48 = arith.constant 0 : index
    %138 = vector.load %arg12[%c0_47, %c0_48] : memref<8x1xf32, #tpu.memory_space<vmem>>, vector<8x1xf32>
    %c0_49 = arith.constant 0 : index
    %c0_50 = arith.constant 0 : index
    %139 = vector.load %arg13[%c0_49, %c0_50] : memref<8x1xf32, #tpu.memory_space<vmem>>, vector<8x1xf32>
    %cst_51 = arith.constant 0.000000e+00 : f32
    %140 = vector.broadcast %cst_51 : f32 to vector<8x1xf32>
    %141 = vector.extract_strided_slice %135 {offsets = [0, 0], sizes = [8, 4], strides = [1, 1]} : vector<8x8xf32> to vector<8x4xf32>
    %142 = vector.extract_strided_slice %141 {offsets = [0, 0], sizes = [8, 3], strides = [1, 1]} : vector<8x4xf32> to vector<8x3xf32>
    %143 = tpu.concatenate %140, %142 in 1 : vector<8x1xf32>, vector<8x3xf32> -> vector<8x4xf32>
    %144 = vector.extract_strided_slice %141 {offsets = [0, 1], sizes = [8, 3], strides = [1, 1]} : vector<8x4xf32> to vector<8x3xf32>
    %145 = tpu.concatenate %144, %140 in 1 : vector<8x3xf32>, vector<8x1xf32> -> vector<8x4xf32>
    %146 = tpu.concatenate %143, %141, %145 in 0 : vector<8x4xf32>, vector<8x4xf32>, vector<8x4xf32> -> vector<24x4xf32>
    %147 = vector.extract_strided_slice %135 {offsets = [0, 4], sizes = [8, 4], strides = [1, 1]} : vector<8x8xf32> to vector<8x4xf32>
    %148 = vector.extract_strided_slice %147 {offsets = [0, 0], sizes = [8, 3], strides = [1, 1]} : vector<8x4xf32> to vector<8x3xf32>
    %149 = tpu.concatenate %140, %148 in 1 : vector<8x1xf32>, vector<8x3xf32> -> vector<8x4xf32>
    %150 = vector.extract_strided_slice %147 {offsets = [0, 1], sizes = [8, 3], strides = [1, 1]} : vector<8x4xf32> to vector<8x3xf32>
    %151 = tpu.concatenate %150, %140 in 1 : vector<8x3xf32>, vector<8x1xf32> -> vector<8x4xf32>
    %152 = tpu.concatenate %149, %147, %151 in 0 : vector<8x4xf32>, vector<8x4xf32>, vector<8x4xf32> -> vector<24x4xf32>
    %153 = tpu.concatenate %146, %152 in 1 : vector<24x4xf32>, vector<24x4xf32> -> vector<24x8xf32>
    %cst_52 = arith.constant dense<0.000000e+00> : vector<8x8xf32>
    %154 = tpu.matmul %136, %153, %cst_52 {dimension_numbers = #tpu.dot_dimension_numbers<[1], [0], [0], [1], [0, 0, 1, 1], [], []>} : vector<8x24xf32>, vector<24x8xf32>, vector<8x8xf32> -> vector<8x8xf32>
    %155 = vector.broadcast %137 : vector<8x1xf32> to vector<8x8xf32>
    %156 = arith.addf %154, %155 : vector<8x8xf32>
    %cst_53 = arith.constant dense<0.000000e+00> : vector<8xf32>
    %157 = vector.multi_reduction <add>, %156, %cst_53 [1] : vector<8x8xf32> to vector<8xf32>
    %158 = vector.shape_cast %157 : vector<8xf32> to vector<8x1xf32>
    %159 = arith.mulf %156, %156 : vector<8x8xf32>
    %cst_54 = arith.constant dense<0.000000e+00> : vector<8xf32>
    %160 = vector.multi_reduction <add>, %159, %cst_54 [1] : vector<8x8xf32> to vector<8xf32>
    %161 = vector.shape_cast %160 : vector<8xf32> to vector<8x1xf32>
    %cst_55 = arith.constant 8.000000e+00 : f32
    %162 = vector.broadcast %cst_55 : f32 to vector<8x1xf32>
    %163 = arith.divf %158, %162 : vector<8x1xf32>
    %cst_56 = arith.constant 8.000000e+00 : f32
    %164 = vector.broadcast %cst_56 : f32 to vector<8x1xf32>
    %165 = arith.divf %161, %164 : vector<8x1xf32>
    %166 = arith.mulf %163, %163 : vector<8x1xf32>
    %167 = arith.subf %165, %166 : vector<8x1xf32>
    %168 = vector.broadcast %163 : vector<8x1xf32> to vector<8x8xf32>
    %169 = arith.subf %156, %168 : vector<8x8xf32>
    %cst_57 = arith.constant 9.99999974E-6 : f32
    %170 = vector.broadcast %cst_57 : f32 to vector<8x1xf32>
    %171 = arith.addf %167, %170 : vector<8x1xf32>
    %172 = math.rsqrt %171 : vector<8x1xf32>
    %173 = vector.broadcast %172 : vector<8x1xf32> to vector<8x8xf32>
    %174 = arith.mulf %169, %173 : vector<8x8xf32>
    %175 = vector.broadcast %138 : vector<8x1xf32> to vector<8x8xf32>
    %176 = arith.mulf %174, %175 : vector<8x8xf32>
    %177 = vector.broadcast %139 : vector<8x1xf32> to vector<8x8xf32>
    %178 = arith.addf %176, %177 : vector<8x8xf32>
    %cst_58 = arith.constant 0.000000e+00 : f32
    %179 = vector.broadcast %cst_58 : f32 to vector<8x8xf32>
    %180 = arith.cmpf ogt, %178, %179 : vector<8x8xf32>
    %cst_59 = arith.constant 2.000000e-01 : f32
    %181 = vector.broadcast %cst_59 : f32 to vector<8x8xf32>
    %182 = arith.mulf %181, %178 : vector<8x8xf32>
    %183 = arith.select %180, %178, %182 : vector<8x8xi1>, vector<8x8xf32>
    %c0_60 = arith.constant 0 : index
    %c0_61 = arith.constant 0 : index
    %184 = vector.load %arg14[%c0_60, %c0_61] : memref<4x24xf32, #tpu.memory_space<vmem>>, vector<4x24xf32>
    %c0_62 = arith.constant 0 : index
    %c0_63 = arith.constant 0 : index
    %185 = vector.load %arg15[%c0_62, %c0_63] : memref<4x1xf32, #tpu.memory_space<vmem>>, vector<4x1xf32>
    %c0_64 = arith.constant 0 : index
    %c0_65 = arith.constant 0 : index
    %186 = vector.load %arg16[%c0_64, %c0_65] : memref<4x1xf32, #tpu.memory_space<vmem>>, vector<4x1xf32>
    %c0_66 = arith.constant 0 : index
    %c0_67 = arith.constant 0 : index
    %187 = vector.load %arg17[%c0_66, %c0_67] : memref<4x1xf32, #tpu.memory_space<vmem>>, vector<4x1xf32>
    %188 = tpu.iota {dimensions = array<i32: 0>} : vector<8x16xi32>
    %189 = tpu.iota {dimensions = array<i32: 1>} : vector<8x16xi32>
    %c2_i32_68 = arith.constant 2 : i32
    %190 = vector.broadcast %c2_i32_68 : i32 to vector<8x16xi32>
    %191 = arith.muli %190, %188 : vector<8x16xi32>
    %192 = arith.cmpi eq, %189, %191 : vector<8x16xi32>
    %c2_i32_69 = arith.constant 2 : i32
    %193 = vector.broadcast %c2_i32_69 : i32 to vector<8x16xi32>
    %194 = arith.muli %193, %188 : vector<8x16xi32>
    %c1_i32_70 = arith.constant 1 : i32
    %195 = vector.broadcast %c1_i32_70 : i32 to vector<8x16xi32>
    %196 = arith.addi %194, %195 : vector<8x16xi32>
    %197 = arith.cmpi eq, %189, %196 : vector<8x16xi32>
    %198 = arith.ori %192, %197 : vector<8x16xi1>
    %199 = arith.extui %198 : vector<8x16xi1> to vector<8x16xi32>
    %200 = arith.sitofp %199 : vector<8x16xi32> to vector<8x16xf32>
    %cst_71 = arith.constant dense<0.000000e+00> : vector<8x16xf32>
    %201 = tpu.matmul %183, %200, %cst_71 {dimension_numbers = #tpu.dot_dimension_numbers<[1], [0], [0], [1], [0, 0, 1, 1], [], []>} : vector<8x8xf32>, vector<8x16xf32>, vector<8x16xf32> -> vector<8x16xf32>
    %cst_72 = arith.constant 0.000000e+00 : f32
    %202 = vector.broadcast %cst_72 : f32 to vector<8x1xf32>
    %203 = vector.extract_strided_slice %201 {offsets = [0, 0], sizes = [8, 8], strides = [1, 1]} : vector<8x16xf32> to vector<8x8xf32>
    %204 = vector.extract_strided_slice %203 {offsets = [0, 0], sizes = [8, 7], strides = [1, 1]} : vector<8x8xf32> to vector<8x7xf32>
    %205 = tpu.concatenate %202, %204 in 1 : vector<8x1xf32>, vector<8x7xf32> -> vector<8x8xf32>
    %206 = vector.extract_strided_slice %203 {offsets = [0, 1], sizes = [8, 7], strides = [1, 1]} : vector<8x8xf32> to vector<8x7xf32>
    %207 = tpu.concatenate %206, %202 in 1 : vector<8x7xf32>, vector<8x1xf32> -> vector<8x8xf32>
    %208 = tpu.concatenate %205, %203, %207 in 0 : vector<8x8xf32>, vector<8x8xf32>, vector<8x8xf32> -> vector<24x8xf32>
    %209 = vector.extract_strided_slice %201 {offsets = [0, 8], sizes = [8, 8], strides = [1, 1]} : vector<8x16xf32> to vector<8x8xf32>
    %210 = vector.extract_strided_slice %209 {offsets = [0, 0], sizes = [8, 7], strides = [1, 1]} : vector<8x8xf32> to vector<8x7xf32>
    %211 = tpu.concatenate %202, %210 in 1 : vector<8x1xf32>, vector<8x7xf32> -> vector<8x8xf32>
    %212 = vector.extract_strided_slice %209 {offsets = [0, 1], sizes = [8, 7], strides = [1, 1]} : vector<8x8xf32> to vector<8x7xf32>
    %213 = tpu.concatenate %212, %202 in 1 : vector<8x7xf32>, vector<8x1xf32> -> vector<8x8xf32>
    %214 = tpu.concatenate %211, %209, %213 in 0 : vector<8x8xf32>, vector<8x8xf32>, vector<8x8xf32> -> vector<24x8xf32>
    %215 = tpu.concatenate %208, %214 in 1 : vector<24x8xf32>, vector<24x8xf32> -> vector<24x16xf32>
    %cst_73 = arith.constant dense<0.000000e+00> : vector<4x16xf32>
    %216 = tpu.matmul %184, %215, %cst_73 {dimension_numbers = #tpu.dot_dimension_numbers<[1], [0], [0], [1], [0, 0, 1, 1], [], []>} : vector<4x24xf32>, vector<24x16xf32>, vector<4x16xf32> -> vector<4x16xf32>
    %217 = vector.broadcast %185 : vector<4x1xf32> to vector<4x16xf32>
    %218 = arith.addf %216, %217 : vector<4x16xf32>
    %cst_74 = arith.constant dense<0.000000e+00> : vector<4xf32>
    %219 = vector.multi_reduction <add>, %218, %cst_74 [1] : vector<4x16xf32> to vector<4xf32>
    %220 = vector.shape_cast %219 : vector<4xf32> to vector<4x1xf32>
    %221 = arith.mulf %218, %218 : vector<4x16xf32>
    %cst_75 = arith.constant dense<0.000000e+00> : vector<4xf32>
    %222 = vector.multi_reduction <add>, %221, %cst_75 [1] : vector<4x16xf32> to vector<4xf32>
    %223 = vector.shape_cast %222 : vector<4xf32> to vector<4x1xf32>
    %cst_76 = arith.constant 1.600000e+01 : f32
    %224 = vector.broadcast %cst_76 : f32 to vector<4x1xf32>
    %225 = arith.divf %220, %224 : vector<4x1xf32>
    %cst_77 = arith.constant 1.600000e+01 : f32
    %226 = vector.broadcast %cst_77 : f32 to vector<4x1xf32>
    %227 = arith.divf %223, %226 : vector<4x1xf32>
    %228 = arith.mulf %225, %225 : vector<4x1xf32>
    %229 = arith.subf %227, %228 : vector<4x1xf32>
    %230 = vector.broadcast %225 : vector<4x1xf32> to vector<4x16xf32>
    %231 = arith.subf %218, %230 : vector<4x16xf32>
    %cst_78 = arith.constant 9.99999974E-6 : f32
    %232 = vector.broadcast %cst_78 : f32 to vector<4x1xf32>
    %233 = arith.addf %229, %232 : vector<4x1xf32>
    %234 = math.rsqrt %233 : vector<4x1xf32>
    %235 = vector.broadcast %234 : vector<4x1xf32> to vector<4x16xf32>
    %236 = arith.mulf %231, %235 : vector<4x16xf32>
    %237 = vector.broadcast %186 : vector<4x1xf32> to vector<4x16xf32>
    %238 = arith.mulf %236, %237 : vector<4x16xf32>
    %239 = vector.broadcast %187 : vector<4x1xf32> to vector<4x16xf32>
    %240 = arith.addf %238, %239 : vector<4x16xf32>
    %cst_79 = arith.constant 0.000000e+00 : f32
    %241 = vector.broadcast %cst_79 : f32 to vector<4x16xf32>
    %242 = arith.cmpf ogt, %240, %241 : vector<4x16xf32>
    %cst_80 = arith.constant 2.000000e-01 : f32
    %243 = vector.broadcast %cst_80 : f32 to vector<4x16xf32>
    %244 = arith.mulf %243, %240 : vector<4x16xf32>
    %245 = arith.select %242, %240, %244 : vector<4x16xi1>, vector<4x16xf32>
    %c0_81 = arith.constant 0 : index
    %c0_82 = arith.constant 0 : index
    %246 = vector.load %arg18[%c0_81, %c0_82] : memref<2x12xf32, #tpu.memory_space<vmem>>, vector<2x12xf32>
    %c0_83 = arith.constant 0 : index
    %c0_84 = arith.constant 0 : index
    %247 = vector.load %arg19[%c0_83, %c0_84] : memref<2x1xf32, #tpu.memory_space<vmem>>, vector<2x1xf32>
    %c0_85 = arith.constant 0 : index
    %c0_86 = arith.constant 0 : index
    %248 = vector.load %arg20[%c0_85, %c0_86] : memref<2x1xf32, #tpu.memory_space<vmem>>, vector<2x1xf32>
    %c0_87 = arith.constant 0 : index
    %c0_88 = arith.constant 0 : index
    %249 = vector.load %arg21[%c0_87, %c0_88] : memref<2x1xf32, #tpu.memory_space<vmem>>, vector<2x1xf32>
    %250 = tpu.iota {dimensions = array<i32: 0>} : vector<16x32xi32>
    %251 = tpu.iota {dimensions = array<i32: 1>} : vector<16x32xi32>
    %c2_i32_89 = arith.constant 2 : i32
    %252 = vector.broadcast %c2_i32_89 : i32 to vector<16x32xi32>
    %253 = arith.muli %252, %250 : vector<16x32xi32>
    %254 = arith.cmpi eq, %251, %253 : vector<16x32xi32>
    %c2_i32_90 = arith.constant 2 : i32
    %255 = vector.broadcast %c2_i32_90 : i32 to vector<16x32xi32>
    %256 = arith.muli %255, %250 : vector<16x32xi32>
    %c1_i32_91 = arith.constant 1 : i32
    %257 = vector.broadcast %c1_i32_91 : i32 to vector<16x32xi32>
    %258 = arith.addi %256, %257 : vector<16x32xi32>
    %259 = arith.cmpi eq, %251, %258 : vector<16x32xi32>
    %260 = arith.ori %254, %259 : vector<16x32xi1>
    %261 = arith.extui %260 : vector<16x32xi1> to vector<16x32xi32>
    %262 = arith.sitofp %261 : vector<16x32xi32> to vector<16x32xf32>
    %cst_92 = arith.constant dense<0.000000e+00> : vector<4x32xf32>
    %263 = tpu.matmul %245, %262, %cst_92 {dimension_numbers = #tpu.dot_dimension_numbers<[1], [0], [0], [1], [0, 0, 1, 1], [], []>} : vector<4x16xf32>, vector<16x32xf32>, vector<4x32xf32> -> vector<4x32xf32>
    %cst_93 = arith.constant 0.000000e+00 : f32
    %264 = vector.broadcast %cst_93 : f32 to vector<4x1xf32>
    %265 = vector.extract_strided_slice %263 {offsets = [0, 0], sizes = [4, 16], strides = [1, 1]} : vector<4x32xf32> to vector<4x16xf32>
    %266 = vector.extract_strided_slice %265 {offsets = [0, 0], sizes = [4, 15], strides = [1, 1]} : vector<4x16xf32> to vector<4x15xf32>
    %267 = tpu.concatenate %264, %266 in 1 : vector<4x1xf32>, vector<4x15xf32> -> vector<4x16xf32>
    %268 = vector.extract_strided_slice %265 {offsets = [0, 1], sizes = [4, 15], strides = [1, 1]} : vector<4x16xf32> to vector<4x15xf32>
    %269 = tpu.concatenate %268, %264 in 1 : vector<4x15xf32>, vector<4x1xf32> -> vector<4x16xf32>
    %270 = tpu.concatenate %267, %265, %269 in 0 : vector<4x16xf32>, vector<4x16xf32>, vector<4x16xf32> -> vector<12x16xf32>
    %271 = vector.extract_strided_slice %263 {offsets = [0, 16], sizes = [4, 16], strides = [1, 1]} : vector<4x32xf32> to vector<4x16xf32>
    %272 = vector.extract_strided_slice %271 {offsets = [0, 0], sizes = [4, 15], strides = [1, 1]} : vector<4x16xf32> to vector<4x15xf32>
    %273 = tpu.concatenate %264, %272 in 1 : vector<4x1xf32>, vector<4x15xf32> -> vector<4x16xf32>
    %274 = vector.extract_strided_slice %271 {offsets = [0, 1], sizes = [4, 15], strides = [1, 1]} : vector<4x16xf32> to vector<4x15xf32>
    %275 = tpu.concatenate %274, %264 in 1 : vector<4x15xf32>, vector<4x1xf32> -> vector<4x16xf32>
    %276 = tpu.concatenate %273, %271, %275 in 0 : vector<4x16xf32>, vector<4x16xf32>, vector<4x16xf32> -> vector<12x16xf32>
    %277 = tpu.concatenate %270, %276 in 1 : vector<12x16xf32>, vector<12x16xf32> -> vector<12x32xf32>
    %cst_94 = arith.constant dense<0.000000e+00> : vector<2x32xf32>
    %278 = tpu.matmul %246, %277, %cst_94 {dimension_numbers = #tpu.dot_dimension_numbers<[1], [0], [0], [1], [0, 0, 1, 1], [], []>} : vector<2x12xf32>, vector<12x32xf32>, vector<2x32xf32> -> vector<2x32xf32>
    %279 = vector.broadcast %247 : vector<2x1xf32> to vector<2x32xf32>
    %280 = arith.addf %278, %279 : vector<2x32xf32>
    %cst_95 = arith.constant dense<0.000000e+00> : vector<2xf32>
    %281 = vector.multi_reduction <add>, %280, %cst_95 [1] : vector<2x32xf32> to vector<2xf32>
    %282 = vector.shape_cast %281 : vector<2xf32> to vector<2x1xf32>
    %283 = arith.mulf %280, %280 : vector<2x32xf32>
    %cst_96 = arith.constant dense<0.000000e+00> : vector<2xf32>
    %284 = vector.multi_reduction <add>, %283, %cst_96 [1] : vector<2x32xf32> to vector<2xf32>
    %285 = vector.shape_cast %284 : vector<2xf32> to vector<2x1xf32>
    %cst_97 = arith.constant 3.200000e+01 : f32
    %286 = vector.broadcast %cst_97 : f32 to vector<2x1xf32>
    %287 = arith.divf %282, %286 : vector<2x1xf32>
    %cst_98 = arith.constant 3.200000e+01 : f32
    %288 = vector.broadcast %cst_98 : f32 to vector<2x1xf32>
    %289 = arith.divf %285, %288 : vector<2x1xf32>
    %290 = arith.mulf %287, %287 : vector<2x1xf32>
    %291 = arith.subf %289, %290 : vector<2x1xf32>
    %292 = vector.broadcast %287 : vector<2x1xf32> to vector<2x32xf32>
    %293 = arith.subf %280, %292 : vector<2x32xf32>
    %cst_99 = arith.constant 9.99999974E-6 : f32
    %294 = vector.broadcast %cst_99 : f32 to vector<2x1xf32>
    %295 = arith.addf %291, %294 : vector<2x1xf32>
    %296 = math.rsqrt %295 : vector<2x1xf32>
    %297 = vector.broadcast %296 : vector<2x1xf32> to vector<2x32xf32>
    %298 = arith.mulf %293, %297 : vector<2x32xf32>
    %299 = vector.broadcast %248 : vector<2x1xf32> to vector<2x32xf32>
    %300 = arith.mulf %298, %299 : vector<2x32xf32>
    %301 = vector.broadcast %249 : vector<2x1xf32> to vector<2x32xf32>
    %302 = arith.addf %300, %301 : vector<2x32xf32>
    %cst_100 = arith.constant 0.000000e+00 : f32
    %303 = vector.broadcast %cst_100 : f32 to vector<2x32xf32>
    %304 = arith.cmpf ogt, %302, %303 : vector<2x32xf32>
    %cst_101 = arith.constant 2.000000e-01 : f32
    %305 = vector.broadcast %cst_101 : f32 to vector<2x32xf32>
    %306 = arith.mulf %305, %302 : vector<2x32xf32>
    %307 = arith.select %304, %302, %306 : vector<2x32xi1>, vector<2x32xf32>
    %c0_102 = arith.constant 0 : index
    %c0_103 = arith.constant 0 : index
    %308 = vector.load %arg22[%c0_102, %c0_103] : memref<2x6xf32, #tpu.memory_space<vmem>>, vector<2x6xf32>
    %c0_104 = arith.constant 0 : index
    %c0_105 = arith.constant 0 : index
    %309 = vector.load %arg23[%c0_104, %c0_105] : memref<2x1xf32, #tpu.memory_space<vmem>>, vector<2x1xf32>
    %cst_106 = arith.constant 0.000000e+00 : f32
    %310 = vector.broadcast %cst_106 : f32 to vector<2x1xf32>
    %311 = vector.extract_strided_slice %307 {offsets = [0, 0], sizes = [2, 16], strides = [1, 1]} : vector<2x32xf32> to vector<2x16xf32>
    %312 = vector.extract_strided_slice %311 {offsets = [0, 0], sizes = [2, 15], strides = [1, 1]} : vector<2x16xf32> to vector<2x15xf32>
    %313 = tpu.concatenate %310, %312 in 1 : vector<2x1xf32>, vector<2x15xf32> -> vector<2x16xf32>
    %314 = vector.extract_strided_slice %311 {offsets = [0, 1], sizes = [2, 15], strides = [1, 1]} : vector<2x16xf32> to vector<2x15xf32>
    %315 = tpu.concatenate %314, %310 in 1 : vector<2x15xf32>, vector<2x1xf32> -> vector<2x16xf32>
    %316 = tpu.concatenate %313, %311, %315 in 0 : vector<2x16xf32>, vector<2x16xf32>, vector<2x16xf32> -> vector<6x16xf32>
    %317 = vector.extract_strided_slice %307 {offsets = [0, 16], sizes = [2, 16], strides = [1, 1]} : vector<2x32xf32> to vector<2x16xf32>
    %318 = vector.extract_strided_slice %317 {offsets = [0, 0], sizes = [2, 15], strides = [1, 1]} : vector<2x16xf32> to vector<2x15xf32>
    %319 = tpu.concatenate %310, %318 in 1 : vector<2x1xf32>, vector<2x15xf32> -> vector<2x16xf32>
    %320 = vector.extract_strided_slice %317 {offsets = [0, 1], sizes = [2, 15], strides = [1, 1]} : vector<2x16xf32> to vector<2x15xf32>
    %321 = tpu.concatenate %320, %310 in 1 : vector<2x15xf32>, vector<2x1xf32> -> vector<2x16xf32>
    %322 = tpu.concatenate %319, %317, %321 in 0 : vector<2x16xf32>, vector<2x16xf32>, vector<2x16xf32> -> vector<6x16xf32>
    %323 = tpu.concatenate %316, %322 in 1 : vector<6x16xf32>, vector<6x16xf32> -> vector<6x32xf32>
    %cst_107 = arith.constant dense<0.000000e+00> : vector<2x32xf32>
    %324 = tpu.matmul %308, %323, %cst_107 {dimension_numbers = #tpu.dot_dimension_numbers<[1], [0], [0], [1], [0, 0, 1, 1], [], []>} : vector<2x6xf32>, vector<6x32xf32>, vector<2x32xf32> -> vector<2x32xf32>
    %325 = vector.broadcast %309 : vector<2x1xf32> to vector<2x32xf32>
    %326 = arith.addf %324, %325 : vector<2x32xf32>
    %327 = math.tanh %326 : vector<2x32xf32>
    %328 = vector.extract_strided_slice %327 {offsets = [0, 0], sizes = [2, 16], strides = [1, 1]} : vector<2x32xf32> to vector<2x16xf32>
    %329 = vector.extract_strided_slice %327 {offsets = [0, 16], sizes = [2, 16], strides = [1, 1]} : vector<2x32xf32> to vector<2x16xf32>
    %330 = vector.shape_cast %328 : vector<2x16xf32> to vector<1x2x16xf32>
    %331 = vector.shape_cast %329 : vector<2x16xf32> to vector<1x2x16xf32>
    %332 = tpu.concatenate %330, %331 in 0 : vector<1x2x16xf32>, vector<1x2x16xf32> -> vector<2x2x16xf32>
    %c0_108 = arith.constant 0 : index
    %c0_109 = arith.constant 0 : index
    %c0_110 = arith.constant 0 : index
    %333 = vector.load %arg24[%c0_108, %c0_109, %c0_110] : memref<2x2x16xf32, #tpu.memory_space<vmem>>, vector<2x2x16xf32>
    tpu.vector_store %arg24[%c0_108, %c0_109, %c0_110], %332 {strides = array<i32>} : memref<2x2x16xf32, #tpu.memory_space<vmem>>, vector<2x2x16xf32>,
    return
  }
  func.func @transform_0(%arg0: i32) -> (i32, i32, i32) {
    %c0_i32 = arith.constant 0 : i32
    %c0_i32_0 = arith.constant 0 : i32
    %c0_i32_1 = arith.constant 0 : i32
    %c0_i32_2 = arith.constant 0 : i32
    return %c0_i32, %c0_i32_0, %c0_i32_1 : i32, i32, i32
  }
  func.func @transform_1(%arg0: i32) -> (i32, i32) {
    %c0_i32 = arith.constant 0 : i32
    %c0_i32_0 = arith.constant 0 : i32
    %c0_i32_1 = arith.constant 0 : i32
    return %c0_i32, %c0_i32_0 : i32, i32
  }
  func.func @transform_2(%arg0: i32) -> (i32, i32) {
    %c0_i32 = arith.constant 0 : i32
    %c0_i32_0 = arith.constant 0 : i32
    %c0_i32_1 = arith.constant 0 : i32
    return %c0_i32, %c0_i32_0 : i32, i32
  }
  func.func @transform_3(%arg0: i32) -> (i32, i32) {
    %c0_i32 = arith.constant 0 : i32
    %c0_i32_0 = arith.constant 0 : i32
    %c0_i32_1 = arith.constant 0 : i32
    return %c0_i32, %c0_i32_0 : i32, i32
  }
  func.func @transform_4(%arg0: i32) -> (i32, i32) {
    %c0_i32 = arith.constant 0 : i32
    %c0_i32_0 = arith.constant 0 : i32
    %c0_i32_1 = arith.constant 0 : i32
    return %c0_i32, %c0_i32_0 : i32, i32
  }
  func.func @transform_5(%arg0: i32) -> (i32, i32) {
    %c0_i32 = arith.constant 0 : i32
    %c0_i32_0 = arith.constant 0 : i32
    %c0_i32_1 = arith.constant 0 : i32
    return %c0_i32, %c0_i32_0 : i32, i32
  }
  func.func @transform_6(%arg0: i32) -> (i32, i32) {
    %c0_i32 = arith.constant 0 : i32
    %c0_i32_0 = arith.constant 0 : i32
    %c0_i32_1 = arith.constant 0 : i32
    return %c0_i32, %c0_i32_0 : i32, i32
  }
  func.func @transform_7(%arg0: i32) -> (i32, i32) {
    %c0_i32 = arith.constant 0 : i32
    %c0_i32_0 = arith.constant 0 : i32
    %c0_i32_1 = arith.constant 0 : i32
    return %c0_i32, %c0_i32_0 : i32, i32
  }
  func.func @transform_8(%arg0: i32) -> (i32, i32) {
    %c0_i32 = arith.constant 0 : i32
    %c0_i32_0 = arith.constant 0 : i32
    %c0_i32_1 = arith.constant 0 : i32
    return %c0_i32, %c0_i32_0 : i32, i32
  }
  func.func @transform_9(%arg0: i32) -> (i32, i32) {
    %c0_i32 = arith.constant 0 : i32
    %c0_i32_0 = arith.constant 0 : i32
    %c0_i32_1 = arith.constant 0 : i32
    return %c0_i32, %c0_i32_0 : i32, i32
  }
  func.func @transform_10(%arg0: i32) -> (i32, i32) {
    %c0_i32 = arith.constant 0 : i32
    %c0_i32_0 = arith.constant 0 : i32
    %c0_i32_1 = arith.constant 0 : i32
    return %c0_i32, %c0_i32_0 : i32, i32
  }
  func.func @transform_11(%arg0: i32) -> (i32, i32) {
    %c0_i32 = arith.constant 0 : i32
    %c0_i32_0 = arith.constant 0 : i32
    %c0_i32_1 = arith.constant 0 : i32
    return %c0_i32, %c0_i32_0 : i32, i32
  }
  func.func @transform_12(%arg0: i32) -> (i32, i32) {
    %c0_i32 = arith.constant 0 : i32
    %c0_i32_0 = arith.constant 0 : i32
    %c0_i32_1 = arith.constant 0 : i32
    return %c0_i32, %c0_i32_0 : i32, i32
  }
  func.func @transform_13(%arg0: i32) -> (i32, i32) {
    %c0_i32 = arith.constant 0 : i32
    %c0_i32_0 = arith.constant 0 : i32
    %c0_i32_1 = arith.constant 0 : i32
    return %c0_i32, %c0_i32_0 : i32, i32
  }
  func.func @transform_14(%arg0: i32) -> (i32, i32) {
    %c0_i32 = arith.constant 0 : i32
    %c0_i32_0 = arith.constant 0 : i32
    %c0_i32_1 = arith.constant 0 : i32
    return %c0_i32, %c0_i32_0 : i32, i32
  }
  func.func @transform_15(%arg0: i32) -> (i32, i32) {
    %c0_i32 = arith.constant 0 : i32
    %c0_i32_0 = arith.constant 0 : i32
    %c0_i32_1 = arith.constant 0 : i32
    return %c0_i32, %c0_i32_0 : i32, i32
  }
  func.func @transform_16(%arg0: i32) -> (i32, i32) {
    %c0_i32 = arith.constant 0 : i32
    %c0_i32_0 = arith.constant 0 : i32
    %c0_i32_1 = arith.constant 0 : i32
    return %c0_i32, %c0_i32_0 : i32, i32
  }
  func.func @transform_17(%arg0: i32) -> (i32, i32) {
    %c0_i32 = arith.constant 0 : i32
    %c0_i32_0 = arith.constant 0 : i32
    %c0_i32_1 = arith.constant 0 : i32
    return %c0_i32, %c0_i32_0 : i32, i32
  }
  func.func @transform_18(%arg0: i32) -> (i32, i32) {
    %c0_i32 = arith.constant 0 : i32
    %c0_i32_0 = arith.constant 0 : i32
    %c0_i32_1 = arith.constant 0 : i32
    return %c0_i32, %c0_i32_0 : i32, i32
  }
  func.func @transform_19(%arg0: i32) -> (i32, i32) {
    %c0_i32 = arith.constant 0 : i32
    %c0_i32_0 = arith.constant 0 : i32
    %c0_i32_1 = arith.constant 0 : i32
    return %c0_i32, %c0_i32_0 : i32, i32
  }
  func.func @transform_20(%arg0: i32) -> (i32, i32) {
    %c0_i32 = arith.constant 0 : i32
    %c0_i32_0 = arith.constant 0 : i32
    %c0_i32_1 = arith.constant 0 : i32
    return %c0_i32, %c0_i32_0 : i32, i32
  }
  func.func @transform_21(%arg0: i32) -> (i32, i32) {
    %c0_i32 = arith.constant 0 : i32
    %c0_i32_0 = arith.constant 0 : i32
    %c0_i32_1 = arith.constant 0 : i32
    return %c0_i32, %c0_i32_0 : i32, i32
  }
  func.func @transform_22(%arg0: i32) -> (i32, i32) {
    %c0_i32 = arith.constant 0 : i32
    %c0_i32_0 = arith.constant 0 : i32
    %c0_i32_1 = arith.constant 0 : i32
    return %c0_i32, %c0_i32_0 : i32, i32
  }
  func.func @transform_23(%arg0: i32) -> (i32, i32, i32) {
    %c0_i32 = arith.constant 0 : i32
    %c0_i32_0 = arith.constant 0 : i32
    %c0_i32_1 = arith.constant 0 : i32
    %c0_i32_2 = arith.constant 0 : i32
    return %c0_i32, %c0_i32_0, %c0_i32_1 : i32, i32, i32
  }
}

</mosaic_0001>

<llo_original>
// kernel: _lambda_.1
$region0: #{_lambda_.1}
  #allocation0 [shape = 'u32[]', space=smem, size = 0x4, offset = 0x4, fixed_abs, tag = 'smem constant byte address 0x4 - core index']
  #allocation1 [shape = 'u32[144,128]{1,0:T(1,128)}', space=vmem, size = 0x12000, scoped, tag = 'internal scratch']
  %s0 = inlined_call_operand.hbm [shape: f32[2,2,16], index: 0, kind: input, shape index: {}]
  %s1 = inlined_call_operand.hbm [shape: f32[4,6], index: 1, kind: input, shape index: {}]
  %s2 = inlined_call_operand.vmem [shape: f32[4,1], index: 2, kind: input, shape index: {}, may-alias: {2,4,14,16}]
  %s3 = inlined_call_operand.hbm [shape: f32[4,1], index: 3, kind: input, shape index: {}]
  %s4 = inlined_call_operand.vmem [shape: f32[4,1], index: 4, kind: input, shape index: {}, may-alias: {2,4,14,16}]
  %s5 = inlined_call_operand.vmem [shape: f32[8,12], index: 5, kind: input, shape index: {}]
  %s6 = inlined_call_operand.vmem [shape: f32[8,1], index: 6, kind: input, shape index: {}, may-alias: {6,8,10,12}]
  %s7 = inlined_call_operand.vmem [shape: f32[8,1], index: 7, kind: input, shape index: {}]
  %s8 = inlined_call_operand.vmem [shape: f32[8,1], index: 8, kind: input, shape index: {}, may-alias: {6,8,10,12}]
  %s9 = inlined_call_operand.vmem [shape: f32[8,24], index: 9, kind: input, shape index: {}]
  %s10 = inlined_call_operand.vmem [shape: f32[8,1], index: 10, kind: input, shape index: {}, may-alias: {6,8,10,12}]
  %s11 = inlined_call_operand.vmem [shape: f32[8,1], index: 11, kind: input, shape index: {}]
  %s12 = inlined_call_operand.vmem [shape: f32[8,1], index: 12, kind: input, shape index: {}, may-alias: {6,8,10,12}]
  %s13 = inlined_call_operand.vmem [shape: f32[4,24], index: 13, kind: input, shape index: {}]
  %s14 = inlined_call_operand.vmem [shape: f32[4,1], index: 14, kind: input, shape index: {}, may-alias: {2,4,14,16}]
  %s15 = inlined_call_operand.vmem [shape: f32[4,1], index: 15, kind: input, shape index: {}]
  %s16 = inlined_call_operand.vmem [shape: f32[4,1], index: 16, kind: input, shape index: {}, may-alias: {2,4,14,16}]
  %s17 = inlined_call_operand.vmem [shape: f32[2,12], index: 17, kind: input, shape index: {}]
  %s18 = inlined_call_operand.vmem [shape: f32[2,1], index: 18, kind: input, shape index: {}, may-alias: {18,20,22}]
  %s19 = inlined_call_operand.vmem [shape: f32[2,1], index: 19, kind: input, shape index: {}]
  %s20 = inlined_call_operand.vmem [shape: f32[2,1], index: 20, kind: input, shape index: {}, may-alias: {18,20,22}]
  %s21 = inlined_call_operand.vmem [shape: f32[2,6], index: 21, kind: input, shape index: {}]
  %s22 = inlined_call_operand.vmem [shape: f32[2,1], index: 22, kind: input, shape index: {}, may-alias: {18,20,22}]
  %s23 = inlined_call_operand.hbm [shape: f32[2,2,16], index: 23, kind: output, shape index: {}]
  %s24 = sld [smem:[#allocation0]]
  $region114: #{_lambda_.1} parent=0
    _
  %s26 = ssub.s32 1, %s24
  %s27 = scalar_select 0, %s26, %s24
  $region1: #{_lambda_.1} parent=0
    #allocation2 [shape = 'u8[2048]{0}', space=vmem, size = 0x800, scoped, tag = 'input window, operand 0, single buffered']
    #allocation3 [shape = 's32[1]{0}', space=sflag, size = 0x4, scoped, tag = 'scoped memory for _lambda_.1']
    #allocation4 [shape = 's32[1]{0}', space=sflag, size = 0x4, scoped, tag = 'scoped memory for _lambda_.1']
    #allocation5 [shape = 'u8[2048]{0}', space=vmem, size = 0x800, scoped, tag = 'input window, operand 1, single buffered']
    #allocation6 [shape = 's32[1]{0}', space=sflag, size = 0x4, scoped, tag = 'scoped memory for _lambda_.1']
    #allocation7 [shape = 'u8[2048]{0}', space=vmem, size = 0x800, scoped, tag = 'input window, operand 3, single buffered']
    #allocation8 [shape = 'u8[2048]{0}', space=vmem, size = 0x800, scoped, tag = 'output window, operand 0, single buffered']
    %28 = vsyncpa [#allocation3], 0
    %29 = vsyncpa [#allocation6], 0
    %30 = vsyncpa [#allocation4], 0
    // Predicated region
    $region2: #{_lambda_.1} parent=1 // pred_check
      _
    $region3: #{_lambda_.1} parent=1 // pred_check_branch
      %32 = sbr.rel (0) target = $region5
    $region4: #{_lambda_.1} parent=1 // pred_region
      %s34 = ssub.s32 64, 64
      %35 = vsyncadd [#allocation3], %s34
      %s36 = sshll.u32 [#allocation2], 4
      %s37 = int_to_ptr.vmem [resolvable:$true] %s36
      %42 = dma.hbm_to_vmem [thread:$0]  %s0, 64, %s37, [#allocation3], 32, 32, 2
    $region5: #{_lambda_.1} parent=1 // pred_fallthru
      _
    // Predicated region
    $region6: #{_lambda_.1} parent=1 // pred_check
      _
    $region7: #{_lambda_.1} parent=1 // pred_check_branch
      %44 = sbr.rel (0) target = $region9
    $region8: #{_lambda_.1} parent=1 // pred_region
      %s46 = ssub.s32 64, 64
      %47 = vsyncadd [#allocation6], %s46
      %s49 = sshll.u32 [#allocation5], 4
      %s50 = int_to_ptr.vmem [resolvable:$true] %s49
      %52 = dma.hbm_to_vmem [thread:$0]  %s1, 64, %s50, [#allocation6]
    $region9: #{_lambda_.1} parent=1 // pred_fallthru
      _
    // Predicated region
    $region10: #{_lambda_.1} parent=1 // pred_check
      _
    $region11: #{_lambda_.1} parent=1 // pred_check_branch
      %54 = sbr.rel (0) target = $region13
    $region12: #{_lambda_.1} parent=1 // pred_region
      _
    $region13: #{_lambda_.1} parent=1 // pred_fallthru
      _
    // Predicated region
    $region14: #{_lambda_.1} parent=1 // pred_check
      _
    $region15: #{_lambda_.1} parent=1 // pred_check_branch
      %56 = sbr.rel (0) target = $region17
    $region16: #{_lambda_.1} parent=1 // pred_region
      %s58 = ssub.s32 64, 64
      %59 = vsyncadd [#allocation6], %s58
      %s61 = sshll.u32 [#allocation7], 4
      %s62 = int_to_ptr.vmem [resolvable:$true] %s61
      %64 = dma.hbm_to_vmem [thread:$0]  %s3, 64, %s62, [#allocation6]
    $region17: #{_lambda_.1} parent=1 // pred_fallthru
      _
    // Predicated region
    $region18: #{_lambda_.1} parent=1 // pred_check
      _
    $region19: #{_lambda_.1} parent=1 // pred_check_branch
      %66 = sbr.rel (0) target = $region21
    $region20: #{_lambda_.1} parent=1 // pred_region
      _
    $region21: #{_lambda_.1} parent=1 // pred_fallthru
      _
    // Predicated region
    $region22: #{_lambda_.1} parent=1 // pred_check
      _
    $region23: #{_lambda_.1} parent=1 // pred_check_branch
      %68 = sbr.rel (0) target = $region25
    $region24: #{_lambda_.1} parent=1 // pred_region
      _
    $region25: #{_lambda_.1} parent=1 // pred_fallthru
      _
    // Predicated region
    $region26: #{_lambda_.1} parent=1 // pred_check
      _
    $region27: #{_lambda_.1} parent=1 // pred_check_branch
      %70 = sbr.rel (0) target = $region29
    $region28: #{_lambda_.1} parent=1 // pred_region
      _
    $region29: #{_lambda_.1} parent=1 // pred_fallthru
      _
    // Predicated region
    $region30: #{_lambda_.1} parent=1 // pred_check
      _
    $region31: #{_lambda_.1} parent=1 // pred_check_branch
      %72 = sbr.rel (0) target = $region33
    $region32: #{_lambda_.1} parent=1 // pred_region
      _
    $region33: #{_lambda_.1} parent=1 // pred_fallthru
      _
    // Predicated region
    $region34: #{_lambda_.1} parent=1 // pred_check
      _
    $region35: #{_lambda_.1} parent=1 // pred_check_branch
      %74 = sbr.rel (0) target = $region37
    $region36: #{_lambda_.1} parent=1 // pred_region
      _
    $region37: #{_lambda_.1} parent=1 // pred_fallthru
      _
    // Predicated region
    $region38: #{_lambda_.1} parent=1 // pred_check
      _
    $region39: #{_lambda_.1} parent=1 // pred_check_branch
      %76 = sbr.rel (0) target = $region41
    $region40: #{_lambda_.1} parent=1 // pred_region
      _
    $region41: #{_lambda_.1} parent=1 // pred_fallthru
      _
    // Predicated region
    $region42: #{_lambda_.1} parent=1 // pred_check
      _
    $region43: #{_lambda_.1} parent=1 // pred_check_branch
      %78 = sbr.rel (0) target = $region45
    $region44: #{_lambda_.1} parent=1 // pred_region
      _
    $region45: #{_lambda_.1} parent=1 // pred_fallthru
      _
    // Predicated region
    $region46: #{_lambda_.1} parent=1 // pred_check
      _
    $region47: #{_lambda_.1} parent=1 // pred_check_branch
      %80 = sbr.rel (0) target = $region49
    $region48: #{_lambda_.1} parent=1 // pred_region
      _
    $region49: #{_lambda_.1} parent=1 // pred_fallthru
      _
    // Predicated region
    $region50: #{_lambda_.1} parent=1 // pred_check
      _
    $region51: #{_lambda_.1} parent=1 // pred_check_branch
      %82 = sbr.rel (0) target = $region53
    $region52: #{_lambda_.1} parent=1 // pred_region
      _
    $region53: #{_lambda_.1} parent=1 // pred_fallthru
      _
    // Predicated region
    $region54: #{_lambda_.1} parent=1 // pred_check
      _
    $region55: #{_lambda_.1} parent=1 // pred_check_branch
      %84 = sbr.rel (0) target = $region57
    $region56: #{_lambda_.1} parent=1 // pred_region
      _
    $region57: #{_lambda_.1} parent=1 // pred_fallthru
      _
    // Predicated region
    $region58: #{_lambda_.1} parent=1 // pred_check
      _
    $region59: #{_lambda_.1} parent=1 // pred_check_branch
      %86 = sbr.rel (0) target = $region61
    $region60: #{_lambda_.1} parent=1 // pred_region
      _
    $region61: #{_lambda_.1} parent=1 // pred_fallthru
      _
    // Predicated region
    $region62: #{_lambda_.1} parent=1 // pred_check
      _
    $region63: #{_lambda_.1} parent=1 // pred_check_branch
      %88 = sbr.rel (0) target = $region65
    $region64: #{_lambda_.1} parent=1 // pred_region
      _
    $region65: #{_lambda_.1} parent=1 // pred_fallthru
      _
    // Predicated region
    $region66: #{_lambda_.1} parent=1 // pred_check
      _
    $region67: #{_lambda_.1} parent=1 // pred_check_branch
      %90 = sbr.rel (0) target = $region69
    $region68: #{_lambda_.1} parent=1 // pred_region
      _
    $region69: #{_lambda_.1} parent=1 // pred_fallthru
      _
    // Predicated region
    $region70: #{_lambda_.1} parent=1 // pred_check
      _
    $region71: #{_lambda_.1} parent=1 // pred_check_branch
      %92 = sbr.rel (0) target = $region73
    $region72: #{_lambda_.1} parent=1 // pred_region
      _
    $region73: #{_lambda_.1} parent=1 // pred_fallthru
      _
    // Predicated region
    $region74: #{_lambda_.1} parent=1 // pred_check
      _
    $region75: #{_lambda_.1} parent=1 // pred_check_branch
      %94 = sbr.rel (0) target = $region77
    $region76: #{_lambda_.1} parent=1 // pred_region
      _
    $region77: #{_lambda_.1} parent=1 // pred_fallthru
      _
    // Predicated region
    $region78: #{_lambda_.1} parent=1 // pred_check
      _
    $region79: #{_lambda_.1} parent=1 // pred_check_branch
      %96 = sbr.rel (0) target = $region81
    $region80: #{_lambda_.1} parent=1 // pred_region
      _
    $region81: #{_lambda_.1} parent=1 // pred_fallthru
      _
    // Predicated region
    $region82: #{_lambda_.1} parent=1 // pred_check
      _
    $region83: #{_lambda_.1} parent=1 // pred_check_branch
      %98 = sbr.rel (0) target = $region85
    $region84: #{_lambda_.1} parent=1 // pred_region
      _
    $region85: #{_lambda_.1} parent=1 // pred_fallthru
      _
    // Predicated region
    $region86: #{_lambda_.1} parent=1 // pred_check
      _
    $region87: #{_lambda_.1} parent=1 // pred_check_branch
      %100 = sbr.rel (0) target = $region89
    $region88: #{_lambda_.1} parent=1 // pred_region
      _
    $region89: #{_lambda_.1} parent=1 // pred_fallthru
      _
    // Predicated region
    $region90: #{_lambda_.1} parent=1 // pred_check
      _
    $region91: #{_lambda_.1} parent=1 // pred_check_branch
      %102 = sbr.rel (0) target = $region93
    $region92: #{_lambda_.1} parent=1 // pred_region
      _
    $region93: #{_lambda_.1} parent=1 // pred_fallthru
      _
    // Predicated region
    $region94: #{_lambda_.1} parent=1 // pred_check
      _
    $region95: #{_lambda_.1} parent=1 // pred_check_branch
      %104 = sbr.rel (0) target = $region97
    $region96: #{_lambda_.1} parent=1 // pred_region
      %105 = dma.done [#allocation3], 64
    $region97: #{_lambda_.1} parent=1 // pred_fallthru
      _
    // Predicated region
    $region98: #{_lambda_.1} parent=1 // pred_check
      _
    $region99: #{_lambda_.1} parent=1 // pred_check_branch
      %107 = sbr.rel (0) target = $region101
    $region100: #{_lambda_.1} parent=1 // pred_region
      %108 = dma.done [#allocation6], 64
    $region101: #{_lambda_.1} parent=1 // pred_fallthru
      _
    // Predicated region
    $region102: #{_lambda_.1} parent=1 // pred_check
      _
    $region103: #{_lambda_.1} parent=1 // pred_check_branch
      %110 = sbr.rel (0) target = $region105
    $region104: #{_lambda_.1} parent=1 // pred_region
      %111 = dma.done [#allocation6], 64
    $region105: #{_lambda_.1} parent=1 // pred_fallthru
      _
    %v112 = vld [vmem:[#allocation2] sm:$0x3]
    %v113 = vld [vmem:[#allocation2 + $0x2] sm:$0x3]
    %115 = vrot.lane.b32.xlu0 %v113, 16
    %v116 = vpop.permute.xlu0 %115
    %vm118 = vcmask 130048
    %v119 = vsel %vm118, %v112, %v116
    %v120 = vld [vmem:[#allocation5] sm:$0xf]
    %v121 = vld [vmem:[%s2] sm:$0xf]
    %v122 = vld [vmem:[#allocation7] sm:$0xf]
    %v123 = vld [vmem:[%s4] sm:$0xf]
    %125 = vrot.lane.b32.xlu0 %v119, 1
    %v126 = vpop.permute.xlu0 %125
    %vm128 = vcmask 7168
    %v129 = vsel %vm128, 0.0, %v126
    %130 = vrot.lane.b32.xlu0 %v119, 127
    %v131 = vpop.permute.xlu0 %130
    %vm133 = vcmask 121856
    %v134 = vsel %vm133, %v131, 0.0
    %v135 = vrot.slane %v119, 6
    %v138 = vrot.slane %v134, 4
    %vm140 = vcmask 1041408
    %v141 = vsel %vm140, %v129, %v135
    %vm142 = vcmask 1043456
    %v143 = vsel %vm142, %v141, %v138
    %144 = vrot.lane.b32.xlu0 %v119, 113
    %v145 = vpop.permute.xlu0 %144
    %v147 = vsel %vm128, 0.0, %v145
    %148 = vrot.lane.b32.xlu0 %v119, 111
    %v149 = vpop.permute.xlu0 %148
    %v151 = vsel %vm133, %v149, 0.0
    %152 = vrot.lane.b32.xlu0 %v135, 112
    %v153 = vpop.permute.xlu0 %152
    %v156 = vrot.slane %v151, 4
    %v158 = vsel %vm140, %v147, %v153
    %v159 = vsel %vm142, %v158, %v156
    %161 = vrot.lane.b32.xlu0 %v159, 16
    %v162 = vpop.permute.xlu0 %161
    %v164 = vsel %vm118, %v143, %v162
    %166 = vset.pattern.permute.xlu0 0
    %167 = vperm.xlu0 %166, %v121
    %v168 = vpop.permute.xlu0 %167
    %vm170 = vcmask 48128
    %v172 = vsel %vm170, %v120, 0
    %vm174 = vcmask 1045504
    %v176 = vsel %vm174, %v164, 0
    %178 = vmatprep.subr.mxu0 0.0
    %179 = vmatpush1.msra.mxu0 %v176
    %180 = vmatprep.subr.mxu0 0.0
    %181 = vmatpush1.msra.mxu0 0.0
    %182 = vmatprep.subr.mxu0 0.0
    %183 = vmatpush1.msra.mxu0 0.0
    %184 = vmatprep.subr.mxu0 0.0
    %185 = vmatpush1.msra.mxu0 0.0
    %186 = vmatprep.subr.mxu0 0.0
    %187 = vmatpush1.msra.mxu0 0.0
    %188 = vmatprep.subr.mxu0 0.0
    %189 = vmatpush1.msra.mxu0 0.0
    %190 = vmatprep.subr.mxu0 0.0
    %191 = vmatpush1.msra.mxu0 0.0
    %192 = vmatprep.subr.mxu0 0.0
    %193 = vmatpush1.msra.mxu0 0.0
    %194 = vmatprep.subr.mxu0 0.0
    %195 = vmatpush1.msra.mxu0 0.0
    %196 = vmatprep.subr.mxu0 0.0
    %197 = vmatpush1.msra.mxu0 0.0
    %198 = vmatprep.subr.mxu0 0.0
    %199 = vmatpush1.msra.mxu0 0.0
    %200 = vmatprep.subr.mxu0 0.0
    %201 = vmatpush1.msra.mxu0 0.0
    %202 = vmatprep.subr.mxu0 0.0
    %203 = vmatpush1.msra.mxu0 0.0
    %204 = vmatprep.subr.mxu0 0.0
    %205 = vmatpush1.msra.mxu0 0.0
    %206 = vmatprep.subr.mxu0 0.0
    %207 = vmatpush1.msra.mxu0 0.0
    %208 = vmatprep.subr.mxu0 0.0
    %209 = vmatpush1.msra.mxu0 0.0
    %210 = vmatprep.subr.mxu0 0.0
    %211 = vmatpush1.msra.mxu0 0.0
    %212 = vmatprep.subr.mxu0 0.0
    %213 = vmatpush1.msra.mxu0 0.0
    %214 = vmatprep.subr.mxu0 0.0
    %215 = vmatpush1.msra.mxu0 0.0
    %216 = vmatprep.subr.mxu0 0.0
    %217 = vmatpush1.msra.mxu0 0.0
    %218 = vmatprep.subr.mxu0 0.0
    %219 = vmatpush1.msra.mxu0 0.0
    %220 = vmatprep.subr.mxu0 0.0
    %221 = vmatpush1.msra.mxu0 0.0
    %222 = vmatprep.subr.mxu0 0.0
    %223 = vmatpush1.msra.mxu0 0.0
    %224 = vmatprep.subr.mxu0 0.0
    %225 = vmatpush1.msra.mxu0 0.0
    %226 = vmatprep.subr.mxu0 0.0
    %227 = vmatpush1.msra.mxu0 0.0
    %228 = vmatprep.subr.mxu0 0.0
    %229 = vmatpush1.msra.mxu0 0.0
    %230 = vmatprep.subr.mxu0 0.0
    %231 = vmatpush1.msra.mxu0 0.0
    %232 = vmatprep.subr.mxu0 0.0
    %233 = vmatpush1.msra.mxu0 0.0
    %234 = vmatprep.subr.mxu0 0.0
    %235 = vmatpush1.msra.mxu0 0.0
    %236 = vmatprep.subr.mxu0 0.0
    %237 = vmatpush1.msra.mxu0 0.0
    %238 = vmatprep.subr.mxu0 0.0
    %239 = vmatpush1.msra.mxu0 0.0
    %240 = vmatprep.subr.mxu0 0.0
    %241 = vmatpush1.msra.mxu0 0.0
    %242 = vmatprep.mubr.f32.mxu0 0.0
    %243 = vmatmul.mubr.f32.gmra.mrb[0].mxu0 %v172
    %v244 = vpop.f32.mrb[0].mxu0
    %v245 = vadd.f32 %v168, %v244
    %v246 = vpop.f32.mrb[0].mxu0
    %247 = vdwg.mxu0
    %vm248 = vcmask 257024
    %v249 = vsel %vm248, %v245, 0.0
    %250 = vadd.xlane.f32.xlu0 %v249
    %v251 = vpop.xlane.xlu0 %250
    %v252 = vmul.f32 %v245, %v245
    %v253 = vsel %vm248, %v252, 0.0
    %254 = vadd.xlane.f32.xlu0 %v253
    %v255 = vpop.xlane.xlu0 %254
    %v256 = vrcp.pop 32.0
    %v257 = vmul.f32 %v251, %v256
    %v258 = vmul.f32 %v255, %v256
    %v259 = vmul.f32 %v257, %v257
    %v260 = vsub.f32 %v258, %v259
    %v261 = vsub.f32 %v245, %v257
    %v262 = vadd.f32 %v260, 1e-05
    %v263 = vrsqrt.pop %v262
    %v264 = vmul.f32 %v261, %v263
    %266 = vset.pattern.permute.xlu0 0
    %267 = vperm.xlu0 %266, %v122
    %v268 = vpop.permute.xlu0 %267
    %v270 = vmul.f32 %v264, %v268
    %272 = vset.pattern.permute.xlu0 0
    %273 = vperm.xlu0 %272, %v123
    %v274 = vpop.permute.xlu0 %273
    %v276 = vadd.f32 %v270, %v274
    %vm277 = vcmp.gt.f32.partialorder %v276, 0.0
    %v278 = vmul.f32 %v276, 0.2
    %v279 = vsel %vm277, %v276, %v278
    %v280 = vlaneseq
    %v281 = vshrl.u32 %v280, 7
    %v282 = vadd.s32 %v281, 8
    %v283 = vadd.s32 %v281, 16
    %v284 = vadd.s32 %v281, 24
    %v285 = vlaneseq
    %v286 = vand.u32 %v285, 127
    %v287 = vmul.u32 %v286, 2
    %vm288 = vcmp.eq.s32.totalorder %v281, %v287
    %vm289 = vcmp.eq.s32.totalorder %v282, %v287
    %vm290 = vcmp.eq.s32.totalorder %v283, %v287
    %vm291 = vcmp.eq.s32.totalorder %v284, %v287
    %v292 = vsel %vm288, 1, 0
    %v293 = vsel %vm289, 1, 0
    %v294 = vsel %vm290, 1, 0
    %v295 = vsel %vm291, 1, 0
    %v296 = vcvt.s32.f32 %v292
    %v297 = vcvt.s32.f32 %v293
    %v298 = vcvt.s32.f32 %v294
    %v299 = vcvt.s32.f32 %v295
    %v300 = vadd.s32 %v287, 1
    %vm301 = vcmp.eq.s32.totalorder %v281, %v300
    %vm302 = vcmp.eq.s32.totalorder %v282, %v300
    %vm303 = vcmp.eq.s32.totalorder %v283, %v300
    %vm304 = vcmp.eq.s32.totalorder %v284, %v300
    %v305 = vsel %vm301, 1, 0
    %v306 = vsel %vm302, 1, 0
    %v307 = vsel %vm303, 1, 0
    %v308 = vsel %vm304, 1, 0
    %v309 = vcvt.s32.f32 %v305
    %v310 = vcvt.s32.f32 %v306
    %v311 = vcvt.s32.f32 %v307
    %v312 = vcvt.s32.f32 %v308
    %vm313 = vcmask 261120
    %v315 = vsel %vm313, %v279, 0
    %317 = vmatprep.subr.mxu0 0.0
    %318 = vmatpush1.msra.mxu0 %v296
    %319 = vmatprep.subr.mxu0 0.0
    %320 = vmatpush1.msra.mxu0 %v297
    %321 = vmatprep.subr.mxu0 0.0
    %322 = vmatpush1.msra.mxu0 %v298
    %323 = vmatprep.subr.mxu0 0.0
    %324 = vmatpush1.msra.mxu0 %v299
    %325 = vmatprep.subr.mxu0 0.0
    %326 = vmatpush1.msra.mxu0 0.0
    %327 = vmatprep.subr.mxu0 0.0
    %328 = vmatpush1.msra.mxu0 0.0
    %329 = vmatprep.subr.mxu0 0.0
    %330 = vmatpush1.msra.mxu0 0.0
    %331 = vmatprep.subr.mxu0 0.0
    %332 = vmatpush1.msra.mxu0 0.0
    %333 = vmatprep.subr.mxu0 0.0
    %334 = vmatpush1.msra.mxu0 0.0
    %335 = vmatprep.subr.mxu0 0.0
    %336 = vmatpush1.msra.mxu0 0.0
    %337 = vmatprep.subr.mxu0 0.0
    %338 = vmatpush1.msra.mxu0 0.0
    %339 = vmatprep.subr.mxu0 0.0
    %340 = vmatpush1.msra.mxu0 0.0
    %341 = vmatprep.subr.mxu0 0.0
    %342 = vmatpush1.msra.mxu0 0.0
    %343 = vmatprep.subr.mxu0 0.0
    %344 = vmatpush1.msra.mxu0 0.0
    %345 = vmatprep.subr.mxu0 0.0
    %346 = vmatpush1.msra.mxu0 0.0
    %347 = vmatprep.subr.mxu0 0.0
    %348 = vmatpush1.msra.mxu0 0.0
    %349 = vmatprep.subr.mxu0 0.0
    %350 = vmatpush1.msra.mxu0 0.0
    %351 = vmatprep.subr.mxu0 0.0
    %352 = vmatpush1.msra.mxu0 0.0
    %353 = vmatprep.subr.mxu0 0.0
    %354 = vmatpush1.msra.mxu0 0.0
    %355 = vmatprep.subr.mxu0 0.0
    %356 = vmatpush1.msra.mxu0 0.0
    %357 = vmatprep.subr.mxu0 0.0
    %358 = vmatpush1.msra.mxu0 0.0
    %359 = vmatprep.subr.mxu0 0.0
    %360 = vmatpush1.msra.mxu0 0.0
    %361 = vmatprep.subr.mxu0 0.0
    %362 = vmatpush1.msra.mxu0 0.0
    %363 = vmatprep.subr.mxu0 0.0
    %364 = vmatpush1.msra.mxu0 0.0
    %365 = vmatprep.subr.mxu0 0.0
    %366 = vmatpush1.msra.mxu0 0.0
    %367 = vmatprep.subr.mxu0 0.0
    %368 = vmatpush1.msra.mxu0 0.0
    %369 = vmatprep.subr.mxu0 0.0
    %370 = vmatpush1.msra.mxu0 0.0
    %371 = vmatprep.subr.mxu0 0.0
    %372 = vmatpush1.msra.mxu0 0.0
    %373 = vmatprep.subr.mxu0 0.0
    %374 = vmatpush1.msra.mxu0 0.0
    %375 = vmatprep.subr.mxu0 0.0
    %376 = vmatpush1.msra.mxu0 0.0
    %377 = vmatprep.subr.mxu0 0.0
    %378 = vmatpush1.msra.mxu0 0.0
    %379 = vmatprep.subr.mxu0 0.0
    %380 = vmatpush1.msra.mxu0 0.0
    %381 = vmatprep.mubr.f32.mxu0 0.0
    %382 = vmatmul.mubr.f32.gmra.mrb[0].mxu0 %v315
    %v383 = vpop.f32.mrb[0].mxu0
    %v384 = vadd.f32 0.0, %v383
    %v385 = vpop.f32.mrb[0].mxu0
    %386 = vdwg.mxu0
    %387 = vmatprep.subr.mxu0 0.0
    %388 = vmatpush1.msra.mxu0 %v309
    %389 = vmatprep.subr.mxu0 0.0
    %390 = vmatpush1.msra.mxu0 %v310
    %391 = vmatprep.subr.mxu0 0.0
    %392 = vmatpush1.msra.mxu0 %v311
    %393 = vmatprep.subr.mxu0 0.0
    %394 = vmatpush1.msra.mxu0 %v312
    %395 = vmatprep.subr.mxu0 0.0
    %396 = vmatpush1.msra.mxu0 0.0
    %397 = vmatprep.subr.mxu0 0.0
    %398 = vmatpush1.msra.mxu0 0.0
    %399 = vmatprep.subr.mxu0 0.0
    %400 = vmatpush1.msra.mxu0 0.0
    %401 = vmatprep.subr.mxu0 0.0
    %402 = vmatpush1.msra.mxu0 0.0
    %403 = vmatprep.subr.mxu0 0.0
    %404 = vmatpush1.msra.mxu0 0.0
    %405 = vmatprep.subr.mxu0 0.0
    %406 = vmatpush1.msra.mxu0 0.0
    %407 = vmatprep.subr.mxu0 0.0
    %408 = vmatpush1.msra.mxu0 0.0
    %409 = vmatprep.subr.mxu0 0.0
    %410 = vmatpush1.msra.mxu0 0.0
    %411 = vmatprep.subr.mxu0 0.0
    %412 = vmatpush1.msra.mxu0 0.0
    %413 = vmatprep.subr.mxu0 0.0
    %414 = vmatpush1.msra.mxu0 0.0
    %415 = vmatprep.subr.mxu0 0.0
    %416 = vmatpush1.msra.mxu0 0.0
    %417 = vmatprep.subr.mxu0 0.0
    %418 = vmatpush1.msra.mxu0 0.0
    %419 = vmatprep.subr.mxu0 0.0
    %420 = vmatpush1.msra.mxu0 0.0
    %421 = vmatprep.subr.mxu0 0.0
    %422 = vmatpush1.msra.mxu0 0.0
    %423 = vmatprep.subr.mxu0 0.0
    %424 = vmatpush1.msra.mxu0 0.0
    %425 = vmatprep.subr.mxu0 0.0
    %426 = vmatpush1.msra.mxu0 0.0
    %427 = vmatprep.subr.mxu0 0.0
    %428 = vmatpush1.msra.mxu0 0.0
    %429 = vmatprep.subr.mxu0 0.0
    %430 = vmatpush1.msra.mxu0 0.0
    %431 = vmatprep.subr.mxu0 0.0
    %432 = vmatpush1.msra.mxu0 0.0
    %433 = vmatprep.subr.mxu0 0.0
    %434 = vmatpush1.msra.mxu0 0.0
    %435 = vmatprep.subr.mxu0 0.0
    %436 = vmatpush1.msra.mxu0 0.0
    %437 = vmatprep.subr.mxu0 0.0
    %438 = vmatpush1.msra.mxu0 0.0
    %439 = vmatprep.subr.mxu0 0.0
    %440 = vmatpush1.msra.mxu0 0.0
    %441 = vmatprep.subr.mxu0 0.0
    %442 = vmatpush1.msra.mxu0 0.0
    %443 = vmatprep.subr.mxu0 0.0
    %444 = vmatpush1.msra.mxu0 0.0
    %445 = vmatprep.subr.mxu0 0.0
    %446 = vmatpush1.msra.mxu0 0.0
    %447 = vmatprep.subr.mxu0 0.0
    %448 = vmatpush1.msra.mxu0 0.0
    %449 = vmatprep.subr.mxu0 0.0
    %450 = vmatpush1.msra.mxu0 0.0
    %451 = vmatprep.mubr.f32.mxu0 0.0
    %452 = vmatmul.mubr.f32.gmra.mrb[0].mxu0 %v315
    %v453 = vpop.f32.mrb[0].mxu0
    %v454 = vadd.f32 0.0, %v453
    %v455 = vpop.f32.mrb[0].mxu0
    %456 = vdwg.mxu0
    %v457 = vmax.f32 %v384, %v454
    %v458 = vld [vmem:[%s5] sm:$0xff]
    %v459 = vld [vmem:[%s6] sm:$0xff]
    %v460 = vld [vmem:[%s7] sm:$0xff]
    %v461 = vld [vmem:[%s8] sm:$0xff]
    %463 = vrot.lane.b32.xlu0 %v457, 1
    %v464 = vpop.permute.xlu0 %463
    %v466 = vsel %vm128, 0.0, %v464
    %467 = vrot.lane.b32.xlu0 %v457, 127
    %v468 = vpop.permute.xlu0 %467
    %vm470 = vcmask 56320
    %v471 = vsel %vm470, %v468, 0.0
    %v472 = vrot.slane %v457, 4
    %v474 = vsel %vm142, %v466, %v472
    %475 = vrot.lane.b32.xlu0 %v457, 121
    %v476 = vpop.permute.xlu0 %475
    %v478 = vsel %vm128, 0.0, %v476
    %479 = vrot.lane.b32.xlu0 %v457, 119
    %v480 = vpop.permute.xlu0 %479
    %v482 = vsel %vm470, %v480, 0.0
    %483 = vrot.lane.b32.xlu0 %v472, 120
    %v484 = vpop.permute.xlu0 %483
    %v486 = vsel %vm142, %v478, %v484
    %489 = vrot.lane.b32.xlu0 %v486, 8
    %v490 = vpop.permute.xlu0 %489
    %491 = vrot.lane.b32.xlu0 %v482, 8
    %v492 = vpop.permute.xlu0 %491
    %vm495 = vcmask 64512
    %v496 = vsel %vm495, %v474, %v490
    %v497 = vsel %vm495, %v471, %v492
    %499 = vset.pattern.permute.xlu0 0
    %500 = vperm.xlu0 %499, %v459
    %v501 = vpop.permute.xlu0 %500
    %vm503 = vcmask 97280
    %v505 = vsel %vm503, %v458, 0
    %v508 = vsel %vm142, %v497, 0
    %510 = vmatprep.subr.mxu0 0.0
    %511 = vmatpush1.msra.mxu0 %v496
    %512 = vmatprep.subr.mxu0 0.0
    %513 = vmatpush1.msra.mxu0 %v508
    %514 = vmatprep.subr.mxu0 0.0
    %515 = vmatpush1.msra.mxu0 0.0
    %516 = vmatprep.subr.mxu0 0.0
    %517 = vmatpush1.msra.mxu0 0.0
    %518 = vmatprep.subr.mxu0 0.0
    %519 = vmatpush1.msra.mxu0 0.0
    %520 = vmatprep.subr.mxu0 0.0
    %521 = vmatpush1.msra.mxu0 0.0
    %522 = vmatprep.subr.mxu0 0.0
    %523 = vmatpush1.msra.mxu0 0.0
    %524 = vmatprep.subr.mxu0 0.0
    %525 = vmatpush1.msra.mxu0 0.0
    %526 = vmatprep.subr.mxu0 0.0
    %527 = vmatpush1.msra.mxu0 0.0
    %528 = vmatprep.subr.mxu0 0.0
    %529 = vmatpush1.msra.mxu0 0.0
    %530 = vmatprep.subr.mxu0 0.0
    %531 = vmatpush1.msra.mxu0 0.0
    %532 = vmatprep.subr.mxu0 0.0
    %533 = vmatpush1.msra.mxu0 0.0
    %534 = vmatprep.subr.mxu0 0.0
    %535 = vmatpush1.msra.mxu0 0.0
    %536 = vmatprep.subr.mxu0 0.0
    %537 = vmatpush1.msra.mxu0 0.0
    %538 = vmatprep.subr.mxu0 0.0
    %539 = vmatpush1.msra.mxu0 0.0
    %540 = vmatprep.subr.mxu0 0.0
    %541 = vmatpush1.msra.mxu0 0.0
    %542 = vmatprep.subr.mxu0 0.0
    %543 = vmatpush1.msra.mxu0 0.0
    %544 = vmatprep.subr.mxu0 0.0
    %545 = vmatpush1.msra.mxu0 0.0
    %546 = vmatprep.subr.mxu0 0.0
    %547 = vmatpush1.msra.mxu0 0.0
    %548 = vmatprep.subr.mxu0 0.0
    %549 = vmatpush1.msra.mxu0 0.0
    %550 = vmatprep.subr.mxu0 0.0
    %551 = vmatpush1.msra.mxu0 0.0
    %552 = vmatprep.subr.mxu0 0.0
    %553 = vmatpush1.msra.mxu0 0.0
    %554 = vmatprep.subr.mxu0 0.0
    %555 = vmatpush1.msra.mxu0 0.0
    %556 = vmatprep.subr.mxu0 0.0
    %557 = vmatpush1.msra.mxu0 0.0
    %558 = vmatprep.subr.mxu0 0.0
    %559 = vmatpush1.msra.mxu0 0.0
    %560 = vmatprep.subr.mxu0 0.0
    %561 = vmatpush1.msra.mxu0 0.0
    %562 = vmatprep.subr.mxu0 0.0
    %563 = vmatpush1.msra.mxu0 0.0
    %564 = vmatprep.subr.mxu0 0.0
    %565 = vmatpush1.msra.mxu0 0.0
    %566 = vmatprep.subr.mxu0 0.0
    %567 = vmatpush1.msra.mxu0 0.0
    %568 = vmatprep.subr.mxu0 0.0
    %569 = vmatpush1.msra.mxu0 0.0
    %570 = vmatprep.subr.mxu0 0.0
    %571 = vmatpush1.msra.mxu0 0.0
    %572 = vmatprep.subr.mxu0 0.0
    %573 = vmatpush1.msra.mxu0 0.0
    %574 = vmatprep.mubr.f32.mxu0 0.0
    %575 = vmatmul.mubr.f32.gmra.mrb[0].mxu0 %v505
    %v576 = vpop.f32.mrb[0].mxu0
    %v577 = vadd.f32 %v501, %v576
    %v578 = vpop.f32.mrb[0].mxu0
    %579 = vdwg.mxu0
    %v580 = vsel %vm118, %v577, 0.0
    %581 = vadd.xlane.f32.xlu0 %v580
    %v582 = vpop.xlane.xlu0 %581
    %v583 = vmul.f32 %v577, %v577
    %v584 = vsel %vm118, %v583, 0.0
    %585 = vadd.xlane.f32.xlu0 %v584
    %v586 = vpop.xlane.xlu0 %585
    %v587 = vrcp.pop 16.0
    %v588 = vmul.f32 %v582, %v587
    %v589 = vmul.f32 %v586, %v587
    %v590 = vmul.f32 %v588, %v588
    %v591 = vsub.f32 %v589, %v590
    %v592 = vsub.f32 %v577, %v588
    %v593 = vadd.f32 %v591, 1e-05
    %v594 = vrsqrt.pop %v593
    %v595 = vmul.f32 %v592, %v594
    %597 = vset.pattern.permute.xlu0 0
    %598 = vperm.xlu0 %597, %v460
    %v599 = vpop.permute.xlu0 %598
    %v601 = vmul.f32 %v595, %v599
    %603 = vset.pattern.permute.xlu0 0
    %604 = vperm.xlu0 %603, %v461
    %v605 = vpop.permute.xlu0 %604
    %v607 = vadd.f32 %v601, %v605
    %vm608 = vcmp.gt.f32.partialorder %v607, 0.0
    %v609 = vmul.f32 %v607, 0.2
    %v610 = vsel %vm608, %v607, %v609
    %v612 = vsel %vm118, %v610, 0
    %614 = vmatprep.subr.mxu0 0.0
    %615 = vmatpush1.msra.mxu0 %v296
    %616 = vmatprep.subr.mxu0 0.0
    %617 = vmatpush1.msra.mxu0 %v297
    %618 = vmatprep.subr.mxu0 0.0
    %619 = vmatpush1.msra.mxu0 0.0
    %620 = vmatprep.subr.mxu0 0.0
    %621 = vmatpush1.msra.mxu0 0.0
    %622 = vmatprep.subr.mxu0 0.0
    %623 = vmatpush1.msra.mxu0 0.0
    %624 = vmatprep.subr.mxu0 0.0
    %625 = vmatpush1.msra.mxu0 0.0
    %626 = vmatprep.subr.mxu0 0.0
    %627 = vmatpush1.msra.mxu0 0.0
    %628 = vmatprep.subr.mxu0 0.0
    %629 = vmatpush1.msra.mxu0 0.0
    %630 = vmatprep.subr.mxu0 0.0
    %631 = vmatpush1.msra.mxu0 0.0
    %632 = vmatprep.subr.mxu0 0.0
    %633 = vmatpush1.msra.mxu0 0.0
    %634 = vmatprep.subr.mxu0 0.0
    %635 = vmatpush1.msra.mxu0 0.0
    %636 = vmatprep.subr.mxu0 0.0
    %637 = vmatpush1.msra.mxu0 0.0
    %638 = vmatprep.subr.mxu0 0.0
    %639 = vmatpush1.msra.mxu0 0.0
    %640 = vmatprep.subr.mxu0 0.0
    %641 = vmatpush1.msra.mxu0 0.0
    %642 = vmatprep.subr.mxu0 0.0
    %643 = vmatpush1.msra.mxu0 0.0
    %644 = vmatprep.subr.mxu0 0.0
    %645 = vmatpush1.msra.mxu0 0.0
    %646 = vmatprep.subr.mxu0 0.0
    %647 = vmatpush1.msra.mxu0 0.0
    %648 = vmatprep.subr.mxu0 0.0
    %649 = vmatpush1.msra.mxu0 0.0
    %650 = vmatprep.subr.mxu0 0.0
    %651 = vmatpush1.msra.mxu0 0.0
    %652 = vmatprep.subr.mxu0 0.0
    %653 = vmatpush1.msra.mxu0 0.0
    %654 = vmatprep.subr.mxu0 0.0
    %655 = vmatpush1.msra.mxu0 0.0
    %656 = vmatprep.subr.mxu0 0.0
    %657 = vmatpush1.msra.mxu0 0.0
    %658 = vmatprep.subr.mxu0 0.0
    %659 = vmatpush1.msra.mxu0 0.0
    %660 = vmatprep.subr.mxu0 0.0
    %661 = vmatpush1.msra.mxu0 0.0
    %662 = vmatprep.subr.mxu0 0.0
    %663 = vmatpush1.msra.mxu0 0.0
    %664 = vmatprep.subr.mxu0 0.0
    %665 = vmatpush1.msra.mxu0 0.0
    %666 = vmatprep.subr.mxu0 0.0
    %667 = vmatpush1.msra.mxu0 0.0
    %668 = vmatprep.subr.mxu0 0.0
    %669 = vmatpush1.msra.mxu0 0.0
    %670 = vmatprep.subr.mxu0 0.0
    %671 = vmatpush1.msra.mxu0 0.0
    %672 = vmatprep.subr.mxu0 0.0
    %673 = vmatpush1.msra.mxu0 0.0
    %674 = vmatprep.subr.mxu0 0.0
    %675 = vmatpush1.msra.mxu0 0.0
    %676 = vmatprep.subr.mxu0 0.0
    %677 = vmatpush1.msra.mxu0 0.0
    %678 = vmatprep.mubr.f32.mxu0 0.0
    %679 = vmatmul.mubr.f32.gmra.mrb[0].mxu0 %v612
    %v680 = vpop.f32.mrb[0].mxu0
    %v681 = vadd.f32 0.0, %v680
    %v682 = vpop.f32.mrb[0].mxu0
    %683 = vdwg.mxu0
    %684 = vmatprep.subr.mxu0 0.0
    %685 = vmatpush1.msra.mxu0 %v309
    %686 = vmatprep.subr.mxu0 0.0
    %687 = vmatpush1.msra.mxu0 %v310
    %688 = vmatprep.subr.mxu0 0.0
    %689 = vmatpush1.msra.mxu0 0.0
    %690 = vmatprep.subr.mxu0 0.0
    %691 = vmatpush1.msra.mxu0 0.0
    %692 = vmatprep.subr.mxu0 0.0
    %693 = vmatpush1.msra.mxu0 0.0
    %694 = vmatprep.subr.mxu0 0.0
    %695 = vmatpush1.msra.mxu0 0.0
    %696 = vmatprep.subr.mxu0 0.0
    %697 = vmatpush1.msra.mxu0 0.0
    %698 = vmatprep.subr.mxu0 0.0
    %699 = vmatpush1.msra.mxu0 0.0
    %700 = vmatprep.subr.mxu0 0.0
    %701 = vmatpush1.msra.mxu0 0.0
    %702 = vmatprep.subr.mxu0 0.0
    %703 = vmatpush1.msra.mxu0 0.0
    %704 = vmatprep.subr.mxu0 0.0
    %705 = vmatpush1.msra.mxu0 0.0
    %706 = vmatprep.subr.mxu0 0.0
    %707 = vmatpush1.msra.mxu0 0.0
    %708 = vmatprep.subr.mxu0 0.0
    %709 = vmatpush1.msra.mxu0 0.0
    %710 = vmatprep.subr.mxu0 0.0
    %711 = vmatpush1.msra.mxu0 0.0
    %712 = vmatprep.subr.mxu0 0.0
    %713 = vmatpush1.msra.mxu0 0.0
    %714 = vmatprep.subr.mxu0 0.0
    %715 = vmatpush1.msra.mxu0 0.0
    %716 = vmatprep.subr.mxu0 0.0
    %717 = vmatpush1.msra.mxu0 0.0
    %718 = vmatprep.subr.mxu0 0.0
    %719 = vmatpush1.msra.mxu0 0.0
    %720 = vmatprep.subr.mxu0 0.0
    %721 = vmatpush1.msra.mxu0 0.0
    %722 = vmatprep.subr.mxu0 0.0
    %723 = vmatpush1.msra.mxu0 0.0
    %724 = vmatprep.subr.mxu0 0.0
    %725 = vmatpush1.msra.mxu0 0.0
    %726 = vmatprep.subr.mxu0 0.0
    %727 = vmatpush1.msra.mxu0 0.0
    %728 = vmatprep.subr.mxu0 0.0
    %729 = vmatpush1.msra.mxu0 0.0
    %730 = vmatprep.subr.mxu0 0.0
    %731 = vmatpush1.msra.mxu0 0.0
    %732 = vmatprep.subr.mxu0 0.0
    %733 = vmatpush1.msra.mxu0 0.0
    %734 = vmatprep.subr.mxu0 0.0
    %735 = vmatpush1.msra.mxu0 0.0
    %736 = vmatprep.subr.mxu0 0.0
    %737 = vmatpush1.msra.mxu0 0.0
    %738 = vmatprep.subr.mxu0 0.0
    %739 = vmatpush1.msra.mxu0 0.0
    %740 = vmatprep.subr.mxu0 0.0
    %741 = vmatpush1.msra.mxu0 0.0
    %742 = vmatprep.subr.mxu0 0.0
    %743 = vmatpush1.msra.mxu0 0.0
    %744 = vmatprep.subr.mxu0 0.0
    %745 = vmatpush1.msra.mxu0 0.0
    %746 = vmatprep.subr.mxu0 0.0
    %747 = vmatpush1.msra.mxu0 0.0
    %748 = vmatprep.mubr.f32.mxu0 0.0
    %749 = vmatmul.mubr.f32.gmra.mrb[0].mxu0 %v612
    %v750 = vpop.f32.mrb[0].mxu0
    %v751 = vadd.f32 0.0, %v750
    %v752 = vpop.f32.mrb[0].mxu0
    %753 = vdwg.mxu0
    %v754 = vmax.f32 %v681, %v751
    %v755 = vld [vmem:[%s9] sm:$0xff]
    %v756 = vld [vmem:[%s10] sm:$0xff]
    %v757 = vld [vmem:[%s11] sm:$0xff]
    %v758 = vld [vmem:[%s12] sm:$0xff]
    %760 = vrot.lane.b32.xlu0 %v754, 1
    %v761 = vpop.permute.xlu0 %760
    %v763 = vsel %vm128, 0.0, %v761
    %764 = vrot.lane.b32.xlu0 %v754, 127
    %v765 = vpop.permute.xlu0 %764
    %vm767 = vcmask 23552
    %v768 = vsel %vm767, %v765, 0.0
    %769 = vrot.lane.b32.xlu0 %v754, 125
    %v770 = vpop.permute.xlu0 %769
    %v772 = vsel %vm128, 0.0, %v770
    %773 = vrot.lane.b32.xlu0 %v754, 123
    %v774 = vpop.permute.xlu0 %773
    %v776 = vsel %vm767, %v774, 0.0
    %777 = vrot.lane.b32.xlu0 %v754, 124
    %v778 = vpop.permute.xlu0 %777
    %781 = vrot.lane.b32.xlu0 %v772, 4
    %v782 = vpop.permute.xlu0 %781
    %783 = vrot.lane.b32.xlu0 %v778, 4
    %v784 = vpop.permute.xlu0 %783
    %785 = vrot.lane.b32.xlu0 %v776, 4
    %v786 = vpop.permute.xlu0 %785
    %vm790 = vcmask 31744
    %v791 = vsel %vm790, %v763, %v782
    %v792 = vsel %vm790, %v754, %v784
    %v793 = vsel %vm790, %v768, %v786
    %795 = vset.pattern.permute.xlu0 0
    %796 = vperm.xlu0 %795, %v756
    %v797 = vpop.permute.xlu0 %796
    %vm799 = vcmask 195584
    %v801 = vsel %vm799, %v755, 0
    %803 = vmatprep.subr.mxu0 0.0
    %804 = vmatpush1.msra.mxu0 %v791
    %805 = vmatprep.subr.mxu0 0.0
    %806 = vmatpush1.msra.mxu0 %v792
    %807 = vmatprep.subr.mxu0 0.0
    %808 = vmatpush1.msra.mxu0 %v793
    %809 = vmatprep.subr.mxu0 0.0
    %810 = vmatpush1.msra.mxu0 0.0
    %811 = vmatprep.subr.mxu0 0.0
    %812 = vmatpush1.msra.mxu0 0.0
    %813 = vmatprep.subr.mxu0 0.0
    %814 = vmatpush1.msra.mxu0 0.0
    %815 = vmatprep.subr.mxu0 0.0
    %816 = vmatpush1.msra.mxu0 0.0
    %817 = vmatprep.subr.mxu0 0.0
    %818 = vmatpush1.msra.mxu0 0.0
    %819 = vmatprep.subr.mxu0 0.0
    %820 = vmatpush1.msra.mxu0 0.0
    %821 = vmatprep.subr.mxu0 0.0
    %822 = vmatpush1.msra.mxu0 0.0
    %823 = vmatprep.subr.mxu0 0.0
    %824 = vmatpush1.msra.mxu0 0.0
    %825 = vmatprep.subr.mxu0 0.0
    %826 = vmatpush1.msra.mxu0 0.0
    %827 = vmatprep.subr.mxu0 0.0
    %828 = vmatpush1.msra.mxu0 0.0
    %829 = vmatprep.subr.mxu0 0.0
    %830 = vmatpush1.msra.mxu0 0.0
    %831 = vmatprep.subr.mxu0 0.0
    %832 = vmatpush1.msra.mxu0 0.0
    %833 = vmatprep.subr.mxu0 0.0
    %834 = vmatpush1.msra.mxu0 0.0
    %835 = vmatprep.subr.mxu0 0.0
    %836 = vmatpush1.msra.mxu0 0.0
    %837 = vmatprep.subr.mxu0 0.0
    %838 = vmatpush1.msra.mxu0 0.0
    %839 = vmatprep.subr.mxu0 0.0
    %840 = vmatpush1.msra.mxu0 0.0
    %841 = vmatprep.subr.mxu0 0.0
    %842 = vmatpush1.msra.mxu0 0.0
    %843 = vmatprep.subr.mxu0 0.0
    %844 = vmatpush1.msra.mxu0 0.0
    %845 = vmatprep.subr.mxu0 0.0
    %846 = vmatpush1.msra.mxu0 0.0
    %847 = vmatprep.subr.mxu0 0.0
    %848 = vmatpush1.msra.mxu0 0.0
    %849 = vmatprep.subr.mxu0 0.0
    %850 = vmatpush1.msra.mxu0 0.0
    %851 = vmatprep.subr.mxu0 0.0
    %852 = vmatpush1.msra.mxu0 0.0
    %853 = vmatprep.subr.mxu0 0.0
    %854 = vmatpush1.msra.mxu0 0.0
    %855 = vmatprep.subr.mxu0 0.0
    %856 = vmatpush1.msra.mxu0 0.0
    %857 = vmatprep.subr.mxu0 0.0
    %858 = vmatpush1.msra.mxu0 0.0
    %859 = vmatprep.subr.mxu0 0.0
    %860 = vmatpush1.msra.mxu0 0.0
    %861 = vmatprep.subr.mxu0 0.0
    %862 = vmatpush1.msra.mxu0 0.0
    %863 = vmatprep.subr.mxu0 0.0
    %864 = vmatpush1.msra.mxu0 0.0
    %865 = vmatprep.subr.mxu0 0.0
    %866 = vmatpush1.msra.mxu0 0.0
    %867 = vmatprep.mubr.f32.mxu0 0.0
    %868 = vmatmul.mubr.f32.gmra.mrb[0].mxu0 %v801
    %v869 = vpop.f32.mrb[0].mxu0
    %v870 = vadd.f32 %v797, %v869
    %v871 = vpop.f32.mrb[0].mxu0
    %872 = vdwg.mxu0
    %v873 = vsel %vm495, %v870, 0.0
    %874 = vadd.xlane.f32.xlu0 %v873
    %v875 = vpop.xlane.xlu0 %874
    %v876 = vmul.f32 %v870, %v870
    %v877 = vsel %vm495, %v876, 0.0
    %878 = vadd.xlane.f32.xlu0 %v877
    %v879 = vpop.xlane.xlu0 %878
    %v880 = vrcp.pop 8.0
    %v881 = vmul.f32 %v875, %v880
    %v882 = vmul.f32 %v879, %v880
    %v883 = vmul.f32 %v881, %v881
    %v884 = vsub.f32 %v882, %v883
    %v885 = vsub.f32 %v870, %v881
    %v886 = vadd.f32 %v884, 1e-05
    %v887 = vrsqrt.pop %v886
    %v888 = vmul.f32 %v885, %v887
    %890 = vset.pattern.permute.xlu0 0
    %891 = vperm.xlu0 %890, %v757
    %v892 = vpop.permute.xlu0 %891
    %v894 = vmul.f32 %v888, %v892
    %896 = vset.pattern.permute.xlu0 0
    %897 = vperm.xlu0 %896, %v758
    %v898 = vpop.permute.xlu0 %897
    %v900 = vadd.f32 %v894, %v898
    %vm901 = vcmp.gt.f32.partialorder %v900, 0.0
    %v902 = vmul.f32 %v900, 0.2
    %v903 = vsel %vm901, %v900, %v902
    %v904 = vld [vmem:[%s13] sm:$0xf]
    %v905 = vld [vmem:[%s14] sm:$0xf]
    %v906 = vld [vmem:[%s15] sm:$0xf]
    %v907 = vld [vmem:[%s16] sm:$0xf]
    %v908 = vmul.u32 %v281, 2
    %vm909 = vcmp.eq.s32.totalorder %v286, %v908
    %v910 = vadd.s32 %v908, 1
    %vm911 = vcmp.eq.s32.totalorder %v286, %v910
    %vm912 = vmor %vm909, %vm911
    %v913 = vsel %vm912, 1, 0
    %v914 = vcvt.s32.f32 %v913
    %v916 = vsel %vm495, %v903, 0
    %918 = vmatprep.subr.mxu0 0.0
    %919 = vmatpush1.msra.mxu0 %v914
    %920 = vmatprep.subr.mxu0 0.0
    %921 = vmatpush1.msra.mxu0 0.0
    %922 = vmatprep.subr.mxu0 0.0
    %923 = vmatpush1.msra.mxu0 0.0
    %924 = vmatprep.subr.mxu0 0.0
    %925 = vmatpush1.msra.mxu0 0.0
    %926 = vmatprep.subr.mxu0 0.0
    %927 = vmatpush1.msra.mxu0 0.0
    %928 = vmatprep.subr.mxu0 0.0
    %929 = vmatpush1.msra.mxu0 0.0
    %930 = vmatprep.subr.mxu0 0.0
    %931 = vmatpush1.msra.mxu0 0.0
    %932 = vmatprep.subr.mxu0 0.0
    %933 = vmatpush1.msra.mxu0 0.0
    %934 = vmatprep.subr.mxu0 0.0
    %935 = vmatpush1.msra.mxu0 0.0
    %936 = vmatprep.subr.mxu0 0.0
    %937 = vmatpush1.msra.mxu0 0.0
    %938 = vmatprep.subr.mxu0 0.0
    %939 = vmatpush1.msra.mxu0 0.0
    %940 = vmatprep.subr.mxu0 0.0
    %941 = vmatpush1.msra.mxu0 0.0
    %942 = vmatprep.subr.mxu0 0.0
    %943 = vmatpush1.msra.mxu0 0.0
    %944 = vmatprep.subr.mxu0 0.0
    %945 = vmatpush1.msra.mxu0 0.0
    %946 = vmatprep.subr.mxu0 0.0
    %947 = vmatpush1.msra.mxu0 0.0
    %948 = vmatprep.subr.mxu0 0.0
    %949 = vmatpush1.msra.mxu0 0.0
    %950 = vmatprep.subr.mxu0 0.0
    %951 = vmatpush1.msra.mxu0 0.0
    %952 = vmatprep.subr.mxu0 0.0
    %953 = vmatpush1.msra.mxu0 0.0
    %954 = vmatprep.subr.mxu0 0.0
    %955 = vmatpush1.msra.mxu0 0.0
    %956 = vmatprep.subr.mxu0 0.0
    %957 = vmatpush1.msra.mxu0 0.0
    %958 = vmatprep.subr.mxu0 0.0
    %959 = vmatpush1.msra.mxu0 0.0
    %960 = vmatprep.subr.mxu0 0.0
    %961 = vmatpush1.msra.mxu0 0.0
    %962 = vmatprep.subr.mxu0 0.0
    %963 = vmatpush1.msra.mxu0 0.0
    %964 = vmatprep.subr.mxu0 0.0
    %965 = vmatpush1.msra.mxu0 0.0
    %966 = vmatprep.subr.mxu0 0.0
    %967 = vmatpush1.msra.mxu0 0.0
    %968 = vmatprep.subr.mxu0 0.0
    %969 = vmatpush1.msra.mxu0 0.0
    %970 = vmatprep.subr.mxu0 0.0
    %971 = vmatpush1.msra.mxu0 0.0
    %972 = vmatprep.subr.mxu0 0.0
    %973 = vmatpush1.msra.mxu0 0.0
    %974 = vmatprep.subr.mxu0 0.0
    %975 = vmatpush1.msra.mxu0 0.0
    %976 = vmatprep.subr.mxu0 0.0
    %977 = vmatpush1.msra.mxu0 0.0
    %978 = vmatprep.subr.mxu0 0.0
    %979 = vmatpush1.msra.mxu0 0.0
    %980 = vmatprep.subr.mxu0 0.0
    %981 = vmatpush1.msra.mxu0 0.0
    %982 = vmatprep.mubr.f32.mxu0 0.0
    %983 = vmatmul.mubr.f32.gmra.mrb[0].mxu0 %v916
    %v984 = vpop.f32.mrb[0].mxu0
    %v985 = vadd.f32 0.0, %v984
    %v986 = vpop.f32.mrb[0].mxu0
    %987 = vdwg.mxu0
    %989 = vrot.lane.b32.xlu0 %v985, 1
    %v990 = vpop.permute.xlu0 %989
    %v992 = vsel %vm128, 0.0, %v990
    %993 = vrot.lane.b32.xlu0 %v985, 127
    %v994 = vpop.permute.xlu0 %993
    %v996 = vsel %vm470, %v994, 0.0
    %997 = vrot.lane.b32.xlu0 %v985, 121
    %v998 = vpop.permute.xlu0 %997
    %v1000 = vsel %vm128, 0.0, %v998
    %1001 = vrot.lane.b32.xlu0 %v985, 119
    %v1002 = vpop.permute.xlu0 %1001
    %v1004 = vsel %vm470, %v1002, 0.0
    %1005 = vrot.lane.b32.xlu0 %v985, 120
    %v1006 = vpop.permute.xlu0 %1005
    %1009 = vrot.lane.b32.xlu0 %v1000, 8
    %v1010 = vpop.permute.xlu0 %1009
    %1011 = vrot.lane.b32.xlu0 %v1006, 8
    %v1012 = vpop.permute.xlu0 %1011
    %1013 = vrot.lane.b32.xlu0 %v1004, 8
    %v1014 = vpop.permute.xlu0 %1013
    %v1018 = vsel %vm495, %v992, %v1010
    %v1019 = vsel %vm495, %v985, %v1012
    %v1020 = vsel %vm495, %v996, %v1014
    %1022 = vset.pattern.permute.xlu0 0
    %1023 = vperm.xlu0 %1022, %v905
    %v1024 = vpop.permute.xlu0 %1023
    %v1027 = vsel %vm799, %v904, 0
    %1029 = vmatprep.subr.mxu0 0.0
    %1030 = vmatpush1.msra.mxu0 %v1018
    %1031 = vmatprep.subr.mxu0 0.0
    %1032 = vmatpush1.msra.mxu0 %v1019
    %1033 = vmatprep.subr.mxu0 0.0
    %1034 = vmatpush1.msra.mxu0 %v1020
    %1035 = vmatprep.subr.mxu0 0.0
    %1036 = vmatpush1.msra.mxu0 0.0
    %1037 = vmatprep.subr.mxu0 0.0
    %1038 = vmatpush1.msra.mxu0 0.0
    %1039 = vmatprep.subr.mxu0 0.0
    %1040 = vmatpush1.msra.mxu0 0.0
    %1041 = vmatprep.subr.mxu0 0.0
    %1042 = vmatpush1.msra.mxu0 0.0
    %1043 = vmatprep.subr.mxu0 0.0
    %1044 = vmatpush1.msra.mxu0 0.0
    %1045 = vmatprep.subr.mxu0 0.0
    %1046 = vmatpush1.msra.mxu0 0.0
    %1047 = vmatprep.subr.mxu0 0.0
    %1048 = vmatpush1.msra.mxu0 0.0
    %1049 = vmatprep.subr.mxu0 0.0
    %1050 = vmatpush1.msra.mxu0 0.0
    %1051 = vmatprep.subr.mxu0 0.0
    %1052 = vmatpush1.msra.mxu0 0.0
    %1053 = vmatprep.subr.mxu0 0.0
    %1054 = vmatpush1.msra.mxu0 0.0
    %1055 = vmatprep.subr.mxu0 0.0
    %1056 = vmatpush1.msra.mxu0 0.0
    %1057 = vmatprep.subr.mxu0 0.0
    %1058 = vmatpush1.msra.mxu0 0.0
    %1059 = vmatprep.subr.mxu0 0.0
    %1060 = vmatpush1.msra.mxu0 0.0
    %1061 = vmatprep.subr.mxu0 0.0
    %1062 = vmatpush1.msra.mxu0 0.0
    %1063 = vmatprep.subr.mxu0 0.0
    %1064 = vmatpush1.msra.mxu0 0.0
    %1065 = vmatprep.subr.mxu0 0.0
    %1066 = vmatpush1.msra.mxu0 0.0
    %1067 = vmatprep.subr.mxu0 0.0
    %1068 = vmatpush1.msra.mxu0 0.0
    %1069 = vmatprep.subr.mxu0 0.0
    %1070 = vmatpush1.msra.mxu0 0.0
    %1071 = vmatprep.subr.mxu0 0.0
    %1072 = vmatpush1.msra.mxu0 0.0
    %1073 = vmatprep.subr.mxu0 0.0
    %1074 = vmatpush1.msra.mxu0 0.0
    %1075 = vmatprep.subr.mxu0 0.0
    %1076 = vmatpush1.msra.mxu0 0.0
    %1077 = vmatprep.subr.mxu0 0.0
    %1078 = vmatpush1.msra.mxu0 0.0
    %1079 = vmatprep.subr.mxu0 0.0
    %1080 = vmatpush1.msra.mxu0 0.0
    %1081 = vmatprep.subr.mxu0 0.0
    %1082 = vmatpush1.msra.mxu0 0.0
    %1083 = vmatprep.subr.mxu0 0.0
    %1084 = vmatpush1.msra.mxu0 0.0
    %1085 = vmatprep.subr.mxu0 0.0
    %1086 = vmatpush1.msra.mxu0 0.0
    %1087 = vmatprep.subr.mxu0 0.0
    %1088 = vmatpush1.msra.mxu0 0.0
    %1089 = vmatprep.subr.mxu0 0.0
    %1090 = vmatpush1.msra.mxu0 0.0
    %1091 = vmatprep.subr.mxu0 0.0
    %1092 = vmatpush1.msra.mxu0 0.0
    %1093 = vmatprep.mubr.f32.mxu0 0.0
    %1094 = vmatmul.mubr.f32.gmra.mrb[0].mxu0 %v1027
    %v1095 = vpop.f32.mrb[0].mxu0
    %v1096 = vadd.f32 %v1024, %v1095
    %v1097 = vpop.f32.mrb[0].mxu0
    %1098 = vdwg.mxu0
    %vm1099 = vcmask 125952
    %v1100 = vsel %vm1099, %v1096, 0.0
    %1101 = vadd.xlane.f32.xlu0 %v1100
    %v1102 = vpop.xlane.xlu0 %1101
    %v1103 = vmul.f32 %v1096, %v1096
    %v1104 = vsel %vm1099, %v1103, 0.0
    %1105 = vadd.xlane.f32.xlu0 %v1104
    %v1106 = vpop.xlane.xlu0 %1105
    %v1107 = vmul.f32 %v1102, %v587
    %v1108 = vmul.f32 %v1106, %v587
    %v1109 = vmul.f32 %v1107, %v1107
    %v1110 = vsub.f32 %v1108, %v1109
    %v1111 = vsub.f32 %v1096, %v1107
    %v1112 = vadd.f32 %v1110, 1e-05
    %v1113 = vrsqrt.pop %v1112
    %v1114 = vmul.f32 %v1111, %v1113
    %1116 = vset.pattern.permute.xlu0 0
    %1117 = vperm.xlu0 %1116, %v906
    %v1118 = vpop.permute.xlu0 %1117
    %v1120 = vmul.f32 %v1114, %v1118
    %1122 = vset.pattern.permute.xlu0 0
    %1123 = vperm.xlu0 %1122, %v907
    %v1124 = vpop.permute.xlu0 %1123
    %v1126 = vadd.f32 %v1120, %v1124
    %vm1127 = vcmp.gt.f32.partialorder %v1126, 0.0
    %v1128 = vmul.f32 %v1126, 0.2
    %v1129 = vsel %vm1127, %v1126, %v1128
    %v1130 = vld [vmem:[%s17] sm:$0x3]
    %v1131 = vld [vmem:[%s18] sm:$0x3]
    %v1132 = vld [vmem:[%s19] sm:$0x3]
    %v1133 = vld [vmem:[%s20] sm:$0x3]
    %v1134 = vmul.u32 %v282, 2
    %vm1135 = vcmp.eq.s32.totalorder %v286, %v1134
    %v1136 = vadd.s32 %v1134, 1
    %vm1137 = vcmp.eq.s32.totalorder %v286, %v1136
    %vm1138 = vmor %vm1135, %vm1137
    %v1139 = vsel %vm1138, 1, 0
    %v1140 = vcvt.s32.f32 %v1139
    %v1142 = vsel %vm118, %v1129, 0
    %1144 = vmatprep.subr.mxu0 0.0
    %1145 = vmatpush1.msra.mxu0 %v914
    %1146 = vmatprep.subr.mxu0 0.0
    %1147 = vmatpush1.msra.mxu0 %v1140
    %1148 = vmatprep.subr.mxu0 0.0
    %1149 = vmatpush1.msra.mxu0 0.0
    %1150 = vmatprep.subr.mxu0 0.0
    %1151 = vmatpush1.msra.mxu0 0.0
    %1152 = vmatprep.subr.mxu0 0.0
    %1153 = vmatpush1.msra.mxu0 0.0
    %1154 = vmatprep.subr.mxu0 0.0
    %1155 = vmatpush1.msra.mxu0 0.0
    %1156 = vmatprep.subr.mxu0 0.0
    %1157 = vmatpush1.msra.mxu0 0.0
    %1158 = vmatprep.subr.mxu0 0.0
    %1159 = vmatpush1.msra.mxu0 0.0
    %1160 = vmatprep.subr.mxu0 0.0
    %1161 = vmatpush1.msra.mxu0 0.0
    %1162 = vmatprep.subr.mxu0 0.0
    %1163 = vmatpush1.msra.mxu0 0.0
    %1164 = vmatprep.subr.mxu0 0.0
    %1165 = vmatpush1.msra.mxu0 0.0
    %1166 = vmatprep.subr.mxu0 0.0
    %1167 = vmatpush1.msra.mxu0 0.0
    %1168 = vmatprep.subr.mxu0 0.0
    %1169 = vmatpush1.msra.mxu0 0.0
    %1170 = vmatprep.subr.mxu0 0.0
    %1171 = vmatpush1.msra.mxu0 0.0
    %1172 = vmatprep.subr.mxu0 0.0
    %1173 = vmatpush1.msra.mxu0 0.0
    %1174 = vmatprep.subr.mxu0 0.0
    %1175 = vmatpush1.msra.mxu0 0.0
    %1176 = vmatprep.subr.mxu0 0.0
    %1177 = vmatpush1.msra.mxu0 0.0
    %1178 = vmatprep.subr.mxu0 0.0
    %1179 = vmatpush1.msra.mxu0 0.0
    %1180 = vmatprep.subr.mxu0 0.0
    %1181 = vmatpush1.msra.mxu0 0.0
    %1182 = vmatprep.subr.mxu0 0.0
    %1183 = vmatpush1.msra.mxu0 0.0
    %1184 = vmatprep.subr.mxu0 0.0
    %1185 = vmatpush1.msra.mxu0 0.0
    %1186 = vmatprep.subr.mxu0 0.0
    %1187 = vmatpush1.msra.mxu0 0.0
    %1188 = vmatprep.subr.mxu0 0.0
    %1189 = vmatpush1.msra.mxu0 0.0
    %1190 = vmatprep.subr.mxu0 0.0
    %1191 = vmatpush1.msra.mxu0 0.0
    %1192 = vmatprep.subr.mxu0 0.0
    %1193 = vmatpush1.msra.mxu0 0.0
    %1194 = vmatprep.subr.mxu0 0.0
    %1195 = vmatpush1.msra.mxu0 0.0
    %1196 = vmatprep.subr.mxu0 0.0
    %1197 = vmatpush1.msra.mxu0 0.0
    %1198 = vmatprep.subr.mxu0 0.0
    %1199 = vmatpush1.msra.mxu0 0.0
    %1200 = vmatprep.subr.mxu0 0.0
    %1201 = vmatpush1.msra.mxu0 0.0
    %1202 = vmatprep.subr.mxu0 0.0
    %1203 = vmatpush1.msra.mxu0 0.0
    %1204 = vmatprep.subr.mxu0 0.0
    %1205 = vmatpush1.msra.mxu0 0.0
    %1206 = vmatprep.subr.mxu0 0.0
    %1207 = vmatpush1.msra.mxu0 0.0
    %1208 = vmatprep.mubr.f32.mxu0 0.0
    %1209 = vmatmul.mubr.f32.gmra.mrb[0].mxu0 %v1142
    %v1210 = vpop.f32.mrb[0].mxu0
    %v1211 = vadd.f32 0.0, %v1210
    %v1212 = vpop.f32.mrb[0].mxu0
    %1213 = vdwg.mxu0
    %1215 = vrot.lane.b32.xlu0 %v1211, 1
    %v1216 = vpop.permute.xlu0 %1215
    %v1218 = vsel %vm128, 0.0, %v1216
    %1219 = vrot.lane.b32.xlu0 %v1211, 127
    %v1220 = vpop.permute.xlu0 %1219
    %v1222 = vsel %vm133, %v1220, 0.0
    %v1223 = vrot.slane %v1211, 4
    %v1225 = vsel %vm142, %v1218, %v1223
    %1226 = vrot.lane.b32.xlu0 %v1211, 113
    %v1227 = vpop.permute.xlu0 %1226
    %v1229 = vsel %vm128, 0.0, %v1227
    %1230 = vrot.lane.b32.xlu0 %v1211, 111
    %v1231 = vpop.permute.xlu0 %1230
    %v1233 = vsel %vm133, %v1231, 0.0
    %1234 = vrot.lane.b32.xlu0 %v1223, 112
    %v1235 = vpop.permute.xlu0 %1234
    %v1237 = vsel %vm142, %v1229, %v1235
    %1240 = vrot.lane.b32.xlu0 %v1237, 16
    %v1241 = vpop.permute.xlu0 %1240
    %1242 = vrot.lane.b32.xlu0 %v1233, 16
    %v1243 = vpop.permute.xlu0 %1242
    %v1246 = vsel %vm118, %v1225, %v1241
    %v1247 = vsel %vm118, %v1222, %v1243
    %1249 = vset.pattern.permute.xlu0 0
    %1250 = vperm.xlu0 %1249, %v1131
    %v1251 = vpop.permute.xlu0 %1250
    %v1254 = vsel %vm503, %v1130, 0
    %v1257 = vsel %vm142, %v1247, 0
    %1259 = vmatprep.subr.mxu0 0.0
    %1260 = vmatpush1.msra.mxu0 %v1246
    %1261 = vmatprep.subr.mxu0 0.0
    %1262 = vmatpush1.msra.mxu0 %v1257
    %1263 = vmatprep.subr.mxu0 0.0
    %1264 = vmatpush1.msra.mxu0 0.0
    %1265 = vmatprep.subr.mxu0 0.0
    %1266 = vmatpush1.msra.mxu0 0.0
    %1267 = vmatprep.subr.mxu0 0.0
    %1268 = vmatpush1.msra.mxu0 0.0
    %1269 = vmatprep.subr.mxu0 0.0
    %1270 = vmatpush1.msra.mxu0 0.0
    %1271 = vmatprep.subr.mxu0 0.0
    %1272 = vmatpush1.msra.mxu0 0.0
    %1273 = vmatprep.subr.mxu0 0.0
    %1274 = vmatpush1.msra.mxu0 0.0
    %1275 = vmatprep.subr.mxu0 0.0
    %1276 = vmatpush1.msra.mxu0 0.0
    %1277 = vmatprep.subr.mxu0 0.0
    %1278 = vmatpush1.msra.mxu0 0.0
    %1279 = vmatprep.subr.mxu0 0.0
    %1280 = vmatpush1.msra.mxu0 0.0
    %1281 = vmatprep.subr.mxu0 0.0
    %1282 = vmatpush1.msra.mxu0 0.0
    %1283 = vmatprep.subr.mxu0 0.0
    %1284 = vmatpush1.msra.mxu0 0.0
    %1285 = vmatprep.subr.mxu0 0.0
    %1286 = vmatpush1.msra.mxu0 0.0
    %1287 = vmatprep.subr.mxu0 0.0
    %1288 = vmatpush1.msra.mxu0 0.0
    %1289 = vmatprep.subr.mxu0 0.0
    %1290 = vmatpush1.msra.mxu0 0.0
    %1291 = vmatprep.subr.mxu0 0.0
    %1292 = vmatpush1.msra.mxu0 0.0
    %1293 = vmatprep.subr.mxu0 0.0
    %1294 = vmatpush1.msra.mxu0 0.0
    %1295 = vmatprep.subr.mxu0 0.0
    %1296 = vmatpush1.msra.mxu0 0.0
    %1297 = vmatprep.subr.mxu0 0.0
    %1298 = vmatpush1.msra.mxu0 0.0
    %1299 = vmatprep.subr.mxu0 0.0
    %1300 = vmatpush1.msra.mxu0 0.0
    %1301 = vmatprep.subr.mxu0 0.0
    %1302 = vmatpush1.msra.mxu0 0.0
    %1303 = vmatprep.subr.mxu0 0.0
    %1304 = vmatpush1.msra.mxu0 0.0
    %1305 = vmatprep.subr.mxu0 0.0
    %1306 = vmatpush1.msra.mxu0 0.0
    %1307 = vmatprep.subr.mxu0 0.0
    %1308 = vmatpush1.msra.mxu0 0.0
    %1309 = vmatprep.subr.mxu0 0.0
    %1310 = vmatpush1.msra.mxu0 0.0
    %1311 = vmatprep.subr.mxu0 0.0
    %1312 = vmatpush1.msra.mxu0 0.0
    %1313 = vmatprep.subr.mxu0 0.0
    %1314 = vmatpush1.msra.mxu0 0.0
    %1315 = vmatprep.subr.mxu0 0.0
    %1316 = vmatpush1.msra.mxu0 0.0
    %1317 = vmatprep.subr.mxu0 0.0
    %1318 = vmatpush1.msra.mxu0 0.0
    %1319 = vmatprep.subr.mxu0 0.0
    %1320 = vmatpush1.msra.mxu0 0.0
    %1321 = vmatprep.subr.mxu0 0.0
    %1322 = vmatpush1.msra.mxu0 0.0
    %1323 = vmatprep.mubr.f32.mxu0 0.0
    %1324 = vmatmul.mubr.f32.gmra.mrb[0].mxu0 %v1254
    %v1325 = vpop.f32.mrb[0].mxu0
    %v1326 = vadd.f32 %v1251, %v1325
    %v1327 = vpop.f32.mrb[0].mxu0
    %1328 = vdwg.mxu0
    %vm1329 = vcmask 254976
    %v1330 = vsel %vm1329, %v1326, 0.0
    %1331 = vadd.xlane.f32.xlu0 %v1330
    %v1332 = vpop.xlane.xlu0 %1331
    %v1333 = vmul.f32 %v1326, %v1326
    %v1334 = vsel %vm1329, %v1333, 0.0
    %1335 = vadd.xlane.f32.xlu0 %v1334
    %v1336 = vpop.xlane.xlu0 %1335
    %v1337 = vmul.f32 %v1332, %v256
    %v1338 = vmul.f32 %v1336, %v256
    %v1339 = vmul.f32 %v1337, %v1337
    %v1340 = vsub.f32 %v1338, %v1339
    %v1341 = vsub.f32 %v1326, %v1337
    %v1342 = vadd.f32 %v1340, 1e-05
    %v1343 = vrsqrt.pop %v1342
    %v1344 = vmul.f32 %v1341, %v1343
    %1346 = vset.pattern.permute.xlu0 0
    %1347 = vperm.xlu0 %1346, %v1132
    %v1348 = vpop.permute.xlu0 %1347
    %v1350 = vmul.f32 %v1344, %v1348
    %1352 = vset.pattern.permute.xlu0 0
    %1353 = vperm.xlu0 %1352, %v1133
    %v1354 = vpop.permute.xlu0 %1353
    %v1356 = vadd.f32 %v1350, %v1354
    %vm1357 = vcmp.gt.f32.partialorder %v1356, 0.0
    %v1358 = vmul.f32 %v1356, 0.2
    %v1359 = vsel %vm1357, %v1356, %v1358
    %v1360 = vld [vmem:[%s21] sm:$0x3]
    %v1361 = vld [vmem:[%s22] sm:$0x3]
    %1363 = vrot.lane.b32.xlu0 %v1359, 1
    %v1364 = vpop.permute.xlu0 %1363
    %v1366 = vsel %vm128, 0.0, %v1364
    %1367 = vrot.lane.b32.xlu0 %v1359, 127
    %v1368 = vpop.permute.xlu0 %1367
    %v1370 = vsel %vm133, %v1368, 0.0
    %v1371 = vrot.slane %v1359, 6
    %v1374 = vrot.slane %v1370, 4
    %v1376 = vsel %vm140, %v1366, %v1371
    %v1377 = vsel %vm142, %v1376, %v1374
    %1378 = vrot.lane.b32.xlu0 %v1359, 113
    %v1379 = vpop.permute.xlu0 %1378
    %v1381 = vsel %vm128, 0.0, %v1379
    %1382 = vrot.lane.b32.xlu0 %v1359, 111
    %v1383 = vpop.permute.xlu0 %1382
    %v1385 = vsel %vm133, %v1383, 0.0
    %1386 = vrot.lane.b32.xlu0 %v1371, 112
    %v1387 = vpop.permute.xlu0 %1386
    %v1390 = vrot.slane %v1385, 4
    %v1392 = vsel %vm140, %v1381, %v1387
    %v1393 = vsel %vm142, %v1392, %v1390
    %1395 = vrot.lane.b32.xlu0 %v1393, 16
    %v1396 = vpop.permute.xlu0 %1395
    %v1398 = vsel %vm118, %v1377, %v1396
    %1400 = vset.pattern.permute.xlu0 0
    %1401 = vperm.xlu0 %1400, %v1361
    %v1402 = vpop.permute.xlu0 %1401
    %v1405 = vsel %vm170, %v1360, 0
    %v1408 = vsel %vm174, %v1398, 0
    %1410 = vmatprep.subr.mxu0 0.0
    %1411 = vmatpush1.msra.mxu0 %v1408
    %1412 = vmatprep.subr.mxu0 0.0
    %1413 = vmatpush1.msra.mxu0 0.0
    %1414 = vmatprep.subr.mxu0 0.0
    %1415 = vmatpush1.msra.mxu0 0.0
    %1416 = vmatprep.subr.mxu0 0.0
    %1417 = vmatpush1.msra.mxu0 0.0
    %1418 = vmatprep.subr.mxu0 0.0
    %1419 = vmatpush1.msra.mxu0 0.0
    %1420 = vmatprep.subr.mxu0 0.0
    %1421 = vmatpush1.msra.mxu0 0.0
    %1422 = vmatprep.subr.mxu0 0.0
    %1423 = vmatpush1.msra.mxu0 0.0
    %1424 = vmatprep.subr.mxu0 0.0
    %1425 = vmatpush1.msra.mxu0 0.0
    %1426 = vmatprep.subr.mxu0 0.0
    %1427 = vmatpush1.msra.mxu0 0.0
    %1428 = vmatprep.subr.mxu0 0.0
    %1429 = vmatpush1.msra.mxu0 0.0
    %1430 = vmatprep.subr.mxu0 0.0
    %1431 = vmatpush1.msra.mxu0 0.0
    %1432 = vmatprep.subr.mxu0 0.0
    %1433 = vmatpush1.msra.mxu0 0.0
    %1434 = vmatprep.subr.mxu0 0.0
    %1435 = vmatpush1.msra.mxu0 0.0
    %1436 = vmatprep.subr.mxu0 0.0
    %1437 = vmatpush1.msra.mxu0 0.0
    %1438 = vmatprep.subr.mxu0 0.0
    %1439 = vmatpush1.msra.mxu0 0.0
    %1440 = vmatprep.subr.mxu0 0.0
    %1441 = vmatpush1.msra.mxu0 0.0
    %1442 = vmatprep.subr.mxu0 0.0
    %1443 = vmatpush1.msra.mxu0 0.0
    %1444 = vmatprep.subr.mxu0 0.0
    %1445 = vmatpush1.msra.mxu0 0.0
    %1446 = vmatprep.subr.mxu0 0.0
    %1447 = vmatpush1.msra.mxu0 0.0
    %1448 = vmatprep.subr.mxu0 0.0
    %1449 = vmatpush1.msra.mxu0 0.0
    %1450 = vmatprep.subr.mxu0 0.0
    %1451 = vmatpush1.msra.mxu0 0.0
    %1452 = vmatprep.subr.mxu0 0.0
    %1453 = vmatpush1.msra.mxu0 0.0
    %1454 = vmatprep.subr.mxu0 0.0
    %1455 = vmatpush1.msra.mxu0 0.0
    %1456 = vmatprep.subr.mxu0 0.0
    %1457 = vmatpush1.msra.mxu0 0.0
    %1458 = vmatprep.subr.mxu0 0.0
    %1459 = vmatpush1.msra.mxu0 0.0
    %1460 = vmatprep.subr.mxu0 0.0
    %1461 = vmatpush1.msra.mxu0 0.0
    %1462 = vmatprep.subr.mxu0 0.0
    %1463 = vmatpush1.msra.mxu0 0.0
    %1464 = vmatprep.subr.mxu0 0.0
    %1465 = vmatpush1.msra.mxu0 0.0
    %1466 = vmatprep.subr.mxu0 0.0
    %1467 = vmatpush1.msra.mxu0 0.0
    %1468 = vmatprep.subr.mxu0 0.0
    %1469 = vmatpush1.msra.mxu0 0.0
    %1470 = vmatprep.subr.mxu0 0.0
    %1471 = vmatpush1.msra.mxu0 0.0
    %1472 = vmatprep.subr.mxu0 0.0
    %1473 = vmatpush1.msra.mxu0 0.0
    %1474 = vmatprep.mubr.f32.mxu0 0.0
    %1475 = vmatmul.mubr.f32.gmra.mrb[0].mxu0 %v1405
    %v1476 = vpop.f32.mrb[0].mxu0
    %v1477 = vadd.f32 %v1402, %v1476
    %v1478 = vpop.f32.mrb[0].mxu0
    %1479 = vdwg.mxu0
    %v1480 = vtanh.pop %v1477
    %1482 = vrot.lane.b32.xlu0 %v1480, 112
    %v1483 = vpop.permute.xlu0 %1482
    %vm1485 = vcmask 123904
    %1486 = vst.msk [vmem:[#allocation8] sm:$0x3] %vm1485, %v1480
    %1487 = vst.msk [vmem:[#allocation8 + $0x2] sm:$0x3] %vm1485, %v1483
    // Predicated region
    $region106: #{_lambda_.1} parent=1 // pred_check
      _
    $region107: #{_lambda_.1} parent=1 // pred_check_branch
      %1489 = sbr.rel (0) target = $region109
    $region108: #{_lambda_.1} parent=1 // pred_region
      %s1491 = ssub.s32 64, 64
      %1492 = vsyncadd [#allocation4], %s1491
      %s1493 = sshll.u32 [#allocation8], 4
      %s1494 = int_to_ptr.vmem [resolvable:$true] %s1493
      %1499 = dma.vmem_to_hbm [thread:$0]  %s1494, 64, %s23, [#allocation4], 32, 32, 2
    $region109: #{_lambda_.1} parent=1 // pred_fallthru
      _
    // Predicated region
    $region110: #{_lambda_.1} parent=1 // pred_check
      _
    $region111: #{_lambda_.1} parent=1 // pred_check_branch
      %1501 = sbr.rel (0) target = $region113
    $region112: #{_lambda_.1} parent=1 // pred_region
      %1502 = dma.done [#allocation4], 64
    $region113: #{_lambda_.1} parent=1 // pred_fallthru
      _
    %1503 = vsyncpa [#allocation3], 1
    %1504 = vsyncpa [#allocation6], 1
    %1505 = vsyncpa [#allocation4], 1

</llo_original>
